<compile_context>
chip_gen: v7x
topology: tpu7x:2x2x1
jax: 0.10.0
libtpu: 0.0.40
codegen_flags: <defaults>
</compile_context>

<pallas_src>
import functools
import math

import jax
import jax.numpy as jnp
from jax.experimental import pallas as pl
from jax.experimental.pallas import tpu as pltpu


def _cdiv(a, b):
    return -(-a // b)


def _round_up(a, b):
    return _cdiv(a, b) * b


def _vmem_plan():
    """Generation-aware (tile_budget_bytes, vmem_limit_bytes, min_grid_steps)."""
    try:
        cap = int(pltpu.get_tpu_info().vmem_capacity_bytes)
    except Exception:
        cap = 64 << 20  # conservative (v7x-sized) fallback
    if cap >= (100 << 20):
        # v5e / v6e: 128 MiB physical VMEM, one TensorCore per chip.
        return 64 << 20, 100 << 20, 2
    # v7x: 64 MiB physical VMEM per TensorCore, two TensorCores per chip
    # (keep >= 4 grid steps so both cores get pipelined work).
    return 32 << 20, 48 << 20, 4


def _plan_tiles(N, in_f, out_f, x_bytes, w_bytes, out_bytes, budget, min_steps, sublane):
    """Pick (tm, tn, weight_single_buffered) against the VMEM budget."""

    def budget_tm(tn, fixed):
        # x tile and out tile are double-buffered by the pipeline.
        per_row = 2 * (in_f * x_bytes + tn * out_bytes)
        avail = budget - fixed
        return 0 if avail <= 0 else avail // per_row

    def shape_tm(tm_budget):
        tm = min(int(tm_budget), 1024)                       # amortize ~0.35us/step
        tm = min(tm, _round_up(_cdiv(N, min_steps), sublane))  # keep >= min_steps steps
        if tm >= 256:
            tm -= tm % 256                                   # full MXU rows (v6e/v7x)
        elif tm >= 128:
            tm -= tm % 128
        else:
            tm -= tm % sublane                               # sublane aligned (16 for bf16 out)
        return max(int(tm), sublane)

    useful = min(128, _round_up(N, sublane))

    # Path A: whole (in_f, out_f) weight + bias resident, single-buffered (1x).
    fixed_a = in_f * out_f * w_bytes + out_f * 4
    tma = budget_tm(out_f, fixed_a)
    if tma >= useful:
        return shape_tm(tma), out_f, True

    # Path B: weight too wide for full residency (v7x 64 MiB VMEM): tile out_f
    # on a second parallel grid axis; weight/bias tiles are then double-buffered.
    for tn in (512, 256, 128):
        tn_c = min(tn, out_f)
        fixed_b = 2 * (in_f * tn_c * w_bytes + tn_c * 4)
        tmb = budget_tm(tn_c, fixed_b)
        need = useful if tn > 128 else sublane
        if tmb >= need:
            return shape_tm(tmb), tn_c, False

    raise ValueError(
        "SineLayer weight does not fit the VMEM tile budget: "
        f"in_features={in_f}, out_features={out_f}, budget={budget} bytes"
    )


def _sine_kernel(x_ref, w_ref, b_ref, o_ref, *, omega_0):
    # x_ref: (tm, in_f) batch tile; w_ref: (in_f, tn); b_ref: (1, tn); o_ref: (tm, tn)
    y = jnp.dot(x_ref[...], w_ref[...], preferred_element_type=jnp.float32)
    y = (y + b_ref[...]) * omega_0
    # TODO(synk): if bundle profiling shows VALU-bound on v6e/v7x, replace jnp.sin
    # with a bounded-range minimax polynomial (SIREN preactivations are ~[-pi,pi]).
    o_ref[...] = jnp.sin(y).astype(o_ref.dtype)


def sine_layer(x, weight_t, bias, omega_0, *, out_dtype=None, compute_dtype=None,
               tm=None, tn=None):
    """SIREN sine layer forward: sin(omega_0 * (x @ weight_t + bias)).

    x:        (N, in_features)
    weight_t: (in_features, out_features)  -- PyTorch weight pre-transposed
    bias:     (out_features,)
    out_dtype:     output dtype (default float32; bfloat16 halves HBM writeback)
    compute_dtype: optional dtype for the MXU inputs (e.g. bfloat16); the
                   accumulation stays float32 in the kernel.
    """
    N, in_f = x.shape
    in_f_w, out_f = weight_t.shape
    assert in_f_w == in_f, "weight_t must be (in_features, out_features)"
    out_dtype = jnp.dtype(out_dtype or jnp.float32)

    if compute_dtype is not None:
        x = x.astype(compute_dtype)
        weight_t = weight_t.astype(compute_dtype)
    bias = bias.astype(jnp.float32).reshape(1, out_f)

    budget, vmem_limit, min_steps = _vmem_plan()
    sublane = 16 if out_dtype.itemsize == 2 else 8

    if tm is None or tn is None:
        tm_p, tn_p, single_buf_w = _plan_tiles(
            N, in_f, out_f,
            jnp.dtype(x.dtype).itemsize, jnp.dtype(weight_t.dtype).itemsize,
            out_dtype.itemsize, budget, min_steps, sublane)
        tm = tm_p if tm is None else int(tm)
        tn = tn_p if tn is None else int(tn)
    else:
        tm, tn = int(tm), int(tn)
        single_buf_w = (tn == out_f)
    tm = max(tm, sublane)

    # NOTE: omega_0 is a compile-time constant; distinct omega_0 values compile
    # separate kernels (SIREN uses one or two fixed omegas, so this is cheap).
    kernel = functools.partial(_sine_kernel, omega_0=float(omega_0))

    n_m = _cdiv(N, tm)  # boundary tile: padded read / masked write, no host pad.
    out_shape = jax.ShapeDtypeStruct((N, out_f), out_dtype)
    semantics = ("parallel",) if tn == out_f else ("parallel", "parallel")
    compiler_params = pltpu.CompilerParams(
        dimension_semantics=semantics,
        vmem_limit_bytes=vmem_limit,
    )

    def build(weight_pipeline_mode):
        if tn == out_f:
            wkw = {} if weight_pipeline_mode is None else dict(pipeline_mode=weight_pipeline_mode)
            grid = (n_m,)
            in_specs = [
                pl.BlockSpec((tm, in_f), lambda i: (i, 0)),            # pipelined x tile
                pl.BlockSpec((in_f, out_f), lambda i: (0, 0), **wkw),  # resident weight
                pl.BlockSpec((1, out_f), lambda i: (0, 0), **wkw),     # resident bias
            ]
            out_specs = pl.BlockSpec((tm, out_f), lambda i: (i, 0))
        else:
            grid = (n_m, _cdiv(out_f, tn))
            in_specs = [
                pl.BlockSpec((tm, in_f), lambda i, j: (i, 0)),
                pl.BlockSpec((in_f, tn), lambda i, j: (0, j)),
                pl.BlockSpec((1, tn), lambda i, j: (0, j)),
            ]
            out_specs = pl.BlockSpec((tm, tn), lambda i, j: (i, j))
        return pl.pallas_call(
            kernel,
            out_shape=out_shape,
            grid_spec=pltpu.PrefetchScalarGridSpec(
                num_scalar_prefetch=0,
                grid=grid,
                in_specs=in_specs,
                out_specs=out_specs,
            ),
            compiler_params=compiler_params,
        )

    if tn == out_f and single_buf_w:
        try:
            # Constant-index weight/bias: single-buffer them; the saved VMEM goes
            # into a larger batch tile.
            return build(pl.Buffered(1))(x, weight_t, bias)
        except Exception:
            pass  # jax version without pipeline_mode support -> default buffering
    return build(None)(x, weight_t, bias)


def init_sine_layer_params(key, in_features, out_features, is_first, omega_0):
    """SIREN init mirroring SineLayer.init_weights (weight returned transposed)."""
    k_w, k_b = jax.random.split(key)
    if is_first:
        bound_w = 1.0 / in_features
    else:
        bound_w = math.sqrt(6.0 / in_features) / omega_0
    weight_t = jax.random.uniform(
        k_w, (in_features, out_features), jnp.float32, -bound_w, bound_w)
    bound_b = 1.0 / math.sqrt(in_features)  # nn.Linear default bias init
    bias = jax.random.uniform(k_b, (out_features,), jnp.float32, -bound_b, bound_b)
    return weight_t, bias


if __name__ == "__main__":
    key = jax.random.PRNGKey(0)
    k_x, k_p, k_p2 = jax.random.split(key, 3)

    # Lane-dense out_features; N deliberately NOT a multiple of the batch tile
    # to exercise the masked boundary tile (no host pad/slice anymore).
    N, in_features, out_features = 300, 32, 128
    omega_0 = 30.0

    x = jax.random.uniform(k_x, (N, in_features), jnp.float32, -1.0, 1.0)
    weight_t, bias = init_sine_layer_params(k_p, in_features, out_features, True, omega_0)
    ref = jnp.sin(omega_0 * (x @ weight_t + bias))

    # 1) f32 output, full-weight-resident (Path A, single-buffered weight).
    out = jax.block_until_ready(sine_layer(x, weight_t, bias, omega_0))
    assert out.shape == (N, out_features)
    assert jnp.allclose(out, ref, atol=2e-4, rtol=2e-4)

    # 2) bf16 output (halved HBM writeback); tm stays 16-aligned.
    out_bf16 = jax.block_until_ready(
        sine_layer(x, weight_t, bias, omega_0, out_dtype=jnp.bfloat16))
    assert out_bf16.dtype == jnp.bfloat16
    assert jnp.allclose(out_bf16.astype(jnp.float32), ref, atol=2e-2, rtol=2e-2)

    # 3) out_features-tiled path (the wide-layer / v7x fallback), forced via tn.
    out_features2 = 256
    weight_t2, bias2 = init_sine_layer_params(k_p2, in_features, out_features2, False, omega_0)
    ref2 = jnp.sin(omega_0 * (x @ weight_t2 + bias2))
    out2 = jax.block_until_ready(
        sine_layer(x, weight_t2, bias2, omega_0, tm=64, tn=128))
    assert out2.shape == (N, out_features2)
    assert jnp.allclose(out2, ref2, atol=2e-4, rtol=2e-4)

    # TODO(synk): a fused multi-SineLayer kernel (activations kept in VMEM across
    # layers) is the next structural win for a full SIREN stack.
    print("KERNEL_OK")
</pallas_src>

<mosaic_0001>
module attributes {stable_mosaic.version = 11 : i64} {
  func.func @_sine_kernel(%arg0: i32, %arg1: memref<80x32xf32, #tpu.memory_space<vmem>>, %arg2: memref<32x128xf32, #tpu.memory_space<vmem>>, %arg3: memref<1x128xf32, #tpu.memory_space<vmem>>, %arg4: memref<80x128xf32, #tpu.memory_space<vmem>>) attributes {dimension_semantics = [#tpu.dimension_semantics<parallel>], iteration_bounds = array<i64: 4>, scalar_prefetch = 0 : i64, scratch_operands = 0 : i64, tpu.core_type = #tpu.core_type<tc>, window_params = [{transform_indices = @transform_0, window_bounds = array<i64: 80, 32>}, {pipeline_mode = #tpu.pipeline_mode<synchronous>, transform_indices = @transform_1, window_bounds = array<i64: 32, 128>}, {pipeline_mode = #tpu.pipeline_mode<synchronous>, transform_indices = @transform_2, window_bounds = array<i64: 1, 128>}, {transform_indices = @transform_3, window_bounds = array<i64: 80, 128>}]} {
    %c0 = arith.constant 0 : index
    %c0_0 = arith.constant 0 : index
    %0 = vector.load %arg1[%c0, %c0_0] : memref<80x32xf32, #tpu.memory_space<vmem>>, vector<80x32xf32>
    %c0_1 = arith.constant 0 : index
    %c0_2 = arith.constant 0 : index
    %1 = vector.load %arg2[%c0_1, %c0_2] : memref<32x128xf32, #tpu.memory_space<vmem>>, vector<32x128xf32>
    %cst = arith.constant dense<0.000000e+00> : vector<80x128xf32>
    %2 = tpu.matmul %0, %1, %cst {dimension_numbers = #tpu.dot_dimension_numbers<[1], [0], [0], [1], [0, 0, 1, 1], [], []>} : vector<80x32xf32>, vector<32x128xf32>, vector<80x128xf32> -> vector<80x128xf32>
    %c0_3 = arith.constant 0 : index
    %c0_4 = arith.constant 0 : index
    %3 = vector.load %arg3[%c0_3, %c0_4] : memref<1x128xf32, #tpu.memory_space<vmem>>, vector<1x128xf32>
    %4 = vector.broadcast %3 : vector<1x128xf32> to vector<80x128xf32>
    %5 = arith.addf %2, %4 : vector<80x128xf32>
    %cst_5 = arith.constant 3.000000e+01 : f32
    %6 = vector.broadcast %cst_5 : f32 to vector<80x128xf32>
    %7 = arith.mulf %5, %6 : vector<80x128xf32>
    %8 = math.sin %7 : vector<80x128xf32>
    %c0_6 = arith.constant 0 : index
    %c0_7 = arith.constant 0 : index
    %9 = vector.load %arg4[%c0_6, %c0_7] : memref<80x128xf32, #tpu.memory_space<vmem>>, vector<80x128xf32>
    tpu.vector_store %arg4[%c0_6, %c0_7], %8 {strides = array<i32>} : memref<80x128xf32, #tpu.memory_space<vmem>>, vector<80x128xf32>,
    return
  }
  func.func @transform_0(%arg0: i32) -> (i32, i32) {
    %c0_i32 = arith.constant 0 : i32
    %c0_i32_0 = arith.constant 0 : i32
    return %arg0, %c0_i32 : i32, i32
  }
  func.func @transform_1(%arg0: i32) -> (i32, i32) {
    %c0_i32 = arith.constant 0 : i32
    %c0_i32_0 = arith.constant 0 : i32
    %c0_i32_1 = arith.constant 0 : i32
    return %c0_i32, %c0_i32_0 : i32, i32
  }
  func.func @transform_2(%arg0: i32) -> (i32, i32) {
    %c0_i32 = arith.constant 0 : i32
    %c0_i32_0 = arith.constant 0 : i32
    %c0_i32_1 = arith.constant 0 : i32
    return %c0_i32, %c0_i32_0 : i32, i32
  }
  func.func @transform_3(%arg0: i32) -> (i32, i32) {
    %c0_i32 = arith.constant 0 : i32
    %c0_i32_0 = arith.constant 0 : i32
    return %arg0, %c0_i32 : i32, i32
  }
}

module attributes {stable_mosaic.version = 11 : i64} {
  func.func @_sine_kernel(%arg0: i32, %arg1: memref<80x32xf32, #tpu.memory_space<vmem>>, %arg2: memref<32x128xf32, #tpu.memory_space<vmem>>, %arg3: memref<1x128xf32, #tpu.memory_space<vmem>>, %arg4: memref<80x128xf32, #tpu.memory_space<vmem>>) attributes {dimension_semantics = [#tpu.dimension_semantics<parallel>], iteration_bounds = array<i64: 4>, scalar_prefetch = 0 : i64, scratch_operands = 0 : i64, tpu.core_type = #tpu.core_type<tc>, window_params = [{transform_indices = @transform_0, window_bounds = array<i64: 80, 32>}, {pipeline_mode = #tpu.pipeline_mode<synchronous>, transform_indices = @transform_1, window_bounds = array<i64: 32, 128>}, {pipeline_mode = #tpu.pipeline_mode<synchronous>, transform_indices = @transform_2, window_bounds = array<i64: 1, 128>}, {transform_indices = @transform_3, window_bounds = array<i64: 80, 128>}]} {
    %c0 = arith.constant 0 : index
    %c0_0 = arith.constant 0 : index
    %0 = vector.load %arg1[%c0, %c0_0] : memref<80x32xf32, #tpu.memory_space<vmem>>, vector<80x32xf32>
    %c0_1 = arith.constant 0 : index
    %c0_2 = arith.constant 0 : index
    %1 = vector.load %arg2[%c0_1, %c0_2] : memref<32x128xf32, #tpu.memory_space<vmem>>, vector<32x128xf32>
    %cst = arith.constant dense<0.000000e+00> : vector<80x128xf32>
    %2 = tpu.matmul %0, %1, %cst {dimension_numbers = #tpu.dot_dimension_numbers<[1], [0], [0], [1], [0, 0, 1, 1], [], []>} : vector<80x32xf32>, vector<32x128xf32>, vector<80x128xf32> -> vector<80x128xf32>
    %c0_3 = arith.constant 0 : index
    %c0_4 = arith.constant 0 : index
    %3 = vector.load %arg3[%c0_3, %c0_4] : memref<1x128xf32, #tpu.memory_space<vmem>>, vector<1x128xf32>
    %4 = vector.broadcast %3 : vector<1x128xf32> to vector<80x128xf32>
    %5 = arith.addf %2, %4 : vector<80x128xf32>
    %cst_5 = arith.constant 3.000000e+01 : f32
    %6 = vector.broadcast %cst_5 : f32 to vector<80x128xf32>
    %7 = arith.mulf %5, %6 : vector<80x128xf32>
    %8 = math.sin %7 : vector<80x128xf32>
    %c0_6 = arith.constant 0 : index
    %c0_7 = arith.constant 0 : index
    %9 = vector.load %arg4[%c0_6, %c0_7] : memref<80x128xf32, #tpu.memory_space<vmem>>, vector<80x128xf32>
    tpu.vector_store %arg4[%c0_6, %c0_7], %8 {strides = array<i32>} : memref<80x128xf32, #tpu.memory_space<vmem>>, vector<80x128xf32>,
    return
  }
  func.func @transform_0(%arg0: i32) -> (i32, i32) {
    %c0_i32 = arith.constant 0 : i32
    %c0_i32_0 = arith.constant 0 : i32
    return %arg0, %c0_i32 : i32, i32
  }
  func.func @transform_1(%arg0: i32) -> (i32, i32) {
    %c0_i32 = arith.constant 0 : i32
    %c0_i32_0 = arith.constant 0 : i32
    %c0_i32_1 = arith.constant 0 : i32
    return %c0_i32, %c0_i32_0 : i32, i32
  }
  func.func @transform_2(%arg0: i32) -> (i32, i32) {
    %c0_i32 = arith.constant 0 : i32
    %c0_i32_0 = arith.constant 0 : i32
    %c0_i32_1 = arith.constant 0 : i32
    return %c0_i32, %c0_i32_0 : i32, i32
  }
  func.func @transform_3(%arg0: i32) -> (i32, i32) {
    %c0_i32 = arith.constant 0 : i32
    %c0_i32_0 = arith.constant 0 : i32
    return %arg0, %c0_i32 : i32, i32
  }
}

</mosaic_0001>

<llo_original>
// kernel: tpu_custom_call.1
$region0: #{tpu_custom_call.1}
  #allocation0 [shape = 'u32[]', space=smem, size = 0x4, offset = 0x4, fixed_abs, tag = 'smem constant byte address 0x4 - core index']
  #allocation1 [shape = 'u32[144,128]{1,0:T(1,128)}', space=vmem, size = 0x12000, scoped, tag = 'internal scratch']
  %s0 = inlined_call_operand.vmem [shape: f32[300,32], index: 0, kind: input, shape index: {}]
  %s1 = inlined_call_operand.vmem [shape: f32[32,128], index: 1, kind: input, shape index: {}]
  %s2 = inlined_call_operand.vmem [shape: f32[1,128], index: 2, kind: input, shape index: {}]
  %s3 = inlined_call_operand.hbm [shape: f32[300,128], index: 3, kind: output, shape index: {}]
  %s4 = sld [smem:[#allocation0]]
  $region45: #{tpu_custom_call.1} parent=0
    _
  %s6 = ssub.s32 1, %s4
  %s7 = scalar_select 0, %s6, %s4
  $region1: #{tpu_custom_call.1} parent=0
    #allocation2 [shape = 'u8[81920]{0}', space=vmem, size = 0x14000, scoped, tag = 'output window, operand 0']
    #allocation3 [shape = 's32[2]{0}', space=sflag, size = 0x8, scoped, tag = 'scoped memory for tpu_custom_call.1']
    %8 = vsyncpa [#allocation3], 0
    %s9 = scalar_lea.sflag [#allocation3], 1
    %10 = vsyncpa %s9, 0
    loop: start=0, step=1, limit=6
    $region2: #{tpu_custom_call.1} parent=1 // loop_pre_header
      _
    $region3: #{tpu_custom_call.1} parent=1 // loop_header
      %s12 = sphi 0, %s16
      %p13 = scmp.ge.s32.totalorder %s12, 6
      %s22 = sphi 0, %s24
      %s25 = sphi 0, %s22
      %s26 = sphi 0, %s25
      %s42 = sphi 0, %s26
      %s46 = sphi 0, %s46
      %s48 = sphi 0, %s46
      %s49 = sphi 0, %s48
      %s63 = sphi 0, %s49
      %s67 = sphi 0, %s67
      %s69 = sphi 0, %s67
      %s70 = sphi 0, %s69
      %s84 = sphi 0, %s70
      %s90 = sphi 0, %s92
      %s93 = sphi 0, %s90
      %s94 = sphi 0, %s93
      %s110 = sphi 0, %s94
    $region4: #{tpu_custom_call.1} parent=1 // loop_header_branch
      %15 = sbr.rel (%p13) target = $region8
    $region5: #{tpu_custom_call.1} parent=1 // loop_body
      %s17 = ssub.s32 %s12, 1
      %s18 = ssub.s32 %s12, 2
      %s19 = sadd.s32 %s12, 1
      %s20 = ssub.s32 %s12, %s19
      %p21 = scmp.eq.s32.totalorder %s20, 0
      %s23 = sadd.s32 %s22, 1
      %s24 = scalar_select %p21, %s22, %s23
      %p27 = pneg %p21
      %p28 = scmp.eq.s32.totalorder %s12, 3
      %p29 = por %p27, %p28
      %p30 = scmp.ne.s32.totalorder %s22, %s25
      %p31 = scmp.eq.s32.totalorder %s12, 0
      %p32 = por %p30, %p31
      %p33 = scmp.ne.s32.totalorder %s22, %s25
      %p34 = scmp.eq.s32.totalorder %s17, 3
      %p35 = por %p33, %p34
      %p36 = scmp.ne.s32.totalorder %s25, %s26
      %p37 = scmp.eq.s32.totalorder %s17, 0
      %p38 = por %p36, %p37
      %p39 = scmp.ne.s32.totalorder %s25, %s26
      %p40 = scmp.eq.s32.totalorder %s18, 3
      %p41 = por %p39, %p40
      %p43 = scmp.ne.s32.totalorder %s26, %s42
      %p44 = scmp.eq.s32.totalorder %s18, 0
      %p45 = por %p43, %p44
      %s47 = sadd.s32 %s46, 1
      %p50 = scmp.eq.s32.totalorder %s12, 3
      %p51 = scmp.ne.s32.totalorder %s46, %s48
      %p52 = scmp.eq.s32.totalorder %s12, 0
      %p53 = por %p51, %p52
      %p54 = scmp.ne.s32.totalorder %s46, %s48
      %p55 = scmp.eq.s32.totalorder %s17, 3
      %p56 = por %p54, %p55
      %p57 = scmp.ne.s32.totalorder %s48, %s49
      %p58 = scmp.eq.s32.totalorder %s17, 0
      %p59 = por %p57, %p58
      %p60 = scmp.ne.s32.totalorder %s48, %s49
      %p61 = scmp.eq.s32.totalorder %s18, 3
      %p62 = por %p60, %p61
      %p64 = scmp.ne.s32.totalorder %s49, %s63
      %p65 = scmp.eq.s32.totalorder %s18, 0
      %p66 = por %p64, %p65
      %s68 = sadd.s32 %s67, 1
      %p71 = scmp.eq.s32.totalorder %s12, 3
      %p72 = scmp.ne.s32.totalorder %s67, %s69
      %p73 = scmp.eq.s32.totalorder %s12, 0
      %p74 = por %p72, %p73
      %p75 = scmp.ne.s32.totalorder %s67, %s69
      %p76 = scmp.eq.s32.totalorder %s17, 3
      %p77 = por %p75, %p76
      %p78 = scmp.ne.s32.totalorder %s69, %s70
      %p79 = scmp.eq.s32.totalorder %s17, 0
      %p80 = por %p78, %p79
      %p81 = scmp.ne.s32.totalorder %s69, %s70
      %p82 = scmp.eq.s32.totalorder %s18, 3
      %p83 = por %p81, %p82
      %p85 = scmp.ne.s32.totalorder %s70, %s84
      %p86 = scmp.eq.s32.totalorder %s18, 0
      %p87 = por %p85, %p86
      %s88 = ssub.s32 %s12, %s19
      %p89 = scmp.eq.s32.totalorder %s88, 0
      %s91 = sadd.s32 %s90, 1
      %s92 = scalar_select %p89, %s90, %s91
      %p95 = pneg %p89
      %p96 = scmp.eq.s32.totalorder %s12, 3
      %p97 = por %p95, %p96
      %p98 = scmp.ne.s32.totalorder %s90, %s93
      %p99 = scmp.eq.s32.totalorder %s12, 0
      %p100 = por %p98, %p99
      %p101 = scmp.ne.s32.totalorder %s90, %s93
      %p102 = scmp.eq.s32.totalorder %s17, 3
      %p103 = por %p101, %p102
      %p104 = scmp.ne.s32.totalorder %s93, %s94
      %p105 = scmp.eq.s32.totalorder %s17, 0
      %p106 = por %p104, %p105
      %p107 = scmp.ne.s32.totalorder %s93, %s94
      %p108 = scmp.eq.s32.totalorder %s18, 3
      %p109 = por %p107, %p108
      %p111 = scmp.ne.s32.totalorder %s94, %s110
      %p112 = scmp.eq.s32.totalorder %s18, 0
      %p113 = por %p111, %p112
      %p114 = scmp.le.s32.totalorder 1, %s12
      %p115 = scmp.lt.s32.totalorder %s12, 5
      %p116 = pnand %p114, %p115
      %p117 = pneg %p116
      // Predicated region
      $region9: #{tpu_custom_call.1} parent=5 // pred_check
        _
      $region10: #{tpu_custom_call.1} parent=5 // pred_check_branch
        %119 = sbr.rel (%p116) target = $region12
      $region11: #{tpu_custom_call.1} parent=5 // pred_region
        %s120 = ssub.s32 %s12, 1
        // Predicated region
        $region13: #{tpu_custom_call.1} parent=11 // pred_check
          %p121 = pneg %p59
        $region14: #{tpu_custom_call.1} parent=11 // pred_check_branch
          %123 = sbr.rel (%p121) target = $region16
        $region15: #{tpu_custom_call.1} parent=11 // pred_region
          _
        $region16: #{tpu_custom_call.1} parent=11 // pred_fallthru
          _
        // Predicated region
        $region17: #{tpu_custom_call.1} parent=11 // pred_check
          %p124 = pneg %p80
        $region18: #{tpu_custom_call.1} parent=11 // pred_check_branch
          %126 = sbr.rel (%p124) target = $region20
        $region19: #{tpu_custom_call.1} parent=11 // pred_region
          _
        $region20: #{tpu_custom_call.1} parent=11 // pred_fallthru
          _
      $region12: #{tpu_custom_call.1} parent=5 // pred_fallthru
        _
      %p127 = scmp.lt.s32.totalorder %s12, 4
      // Predicated region
      $region21: #{tpu_custom_call.1} parent=5 // pred_check
        %p128 = pneg %p127
      $region22: #{tpu_custom_call.1} parent=5 // pred_check_branch
        %130 = sbr.rel (%p128) target = $region24
      $region23: #{tpu_custom_call.1} parent=5 // pred_region
        // Predicated region
        $region25: #{tpu_custom_call.1} parent=23 // pred_check
          %p131 = pneg %p32
        $region26: #{tpu_custom_call.1} parent=23 // pred_check_branch
          %133 = sbr.rel (%p131) target = $region28
        $region27: #{tpu_custom_call.1} parent=23 // pred_region
          %s134 = smul.u32 10, %s12
          %s135 = ssub.s32 38, %s134
          %p136 = scmp.lt.s32.totalorder %s135, 10
          %s137 = scalar_select %p136, %s135, 10
          %s138 = smul.u32 128, %s137
          %p139 = scmp.lt.s32.totalorder %s134, 37
          %s140 = scalar_select %p139, %s134, 37
          %s141 = smul.addr %s140, 8
          %s142 = scalar_lea.vmem %s0, %s141
          %s143 = smul.u32 10, %s12
          %s144 = ssub.s32 38, %s143
          %p145 = scmp.lt.s32.totalorder %s144, 10
          %s146 = scalar_select %p145, %s144, 10
          %s147 = smul.u32 128, %s146
        $region28: #{tpu_custom_call.1} parent=23 // pred_fallthru
          _
      $region24: #{tpu_custom_call.1} parent=5 // pred_fallthru
        _
      %p148 = scmp.le.s32.totalorder 1, %s12
      %p149 = scmp.lt.s32.totalorder %s12, 5
      %p150 = pnand %p148, %p149
      %p151 = pneg %p150
      // Predicated region
      $region29: #{tpu_custom_call.1} parent=5 // pred_check
        _
      $region30: #{tpu_custom_call.1} parent=5 // pred_check_branch
        %153 = sbr.rel (%p150) target = $region32
      $region31: #{tpu_custom_call.1} parent=5 // pred_region
        %s154 = ssub.s32 %s12, 1
        %s155 = smul.u32 10, %s17
        %s156 = ssub.s32 38, %s155
        %p157 = scmp.lt.s32.totalorder %s156, 10
        %s158 = scalar_select %p157, %s156, 10
        %s159 = smul.u32 128, %s158
        %p160 = scmp.lt.s32.totalorder %s155, 37
        %s161 = scalar_select %p160, %s155, 37
        %s162 = smul.addr %s161, 8
        %s163 = scalar_lea.vmem %s0, %s162
        %p164 = pneg %p38
        %p165 = pneg %p35
        %p166 = pneg %p59
        %p167 = pneg %p56
        %p168 = pneg %p80
        %p169 = pneg %p77
        %p170 = pneg %p106
        %p171 = pneg %p103
        %s172 = sand.u32 %s93, 1
        %s173 = scalar_lea.sflag [#allocation3], %s172
        %s174 = sand.u32 %s93, 1
        %s175 = smul.addr %s174, 80
        %s176 = scalar_lea.vmem [#allocation2], %s175
        %s177 = smul.u32 10, %s17
        %s178 = ssub.s32 38, %s177
        %p179 = scmp.lt.s32.totalorder %s178, 10
        %s180 = scalar_select %p179, %s178, 10
        %s181 = smul.u32 128, %s180
        %p182 = scmp.lt.s32.totalorder %s177, 37
        %s183 = scalar_select %p182, %s177, 37
        %s184 = smul.addr %s183, 8
        %s185 = scalar_lea.vmem %s0, %s184
        %s186 = smul.u32 10, %s17
        %s187 = ssub.s32 38, %s186
        %p188 = scmp.lt.s32.totalorder %s187, 10
        %s189 = scalar_select %p188, %s187, 10
        %s190 = smul.u32 128, %s189
        %s191 = smul.u32 10, %s17
        %s192 = ssub.s32 38, %s191
        %p193 = scmp.lt.s32.totalorder %s192, 10
        %s194 = scalar_select %p193, %s192, 10
        %s195 = smul.u32 128, %s194
        %v196 = vld [vmem:[%s185] sm:$0xff]
        %v197 = vld [vmem:[%s185 + $0x8] sm:$0xff]
        %v198 = vld [vmem:[%s185 + $0x10] sm:$0xff]
        %v199 = vld [vmem:[%s185 + $0x18] sm:$0xff]
        %v200 = vld [vmem:[%s185 + $0x20] sm:$0xff]
        %v201 = vld [vmem:[%s185 + $0x28] sm:$0xff]
        %v202 = vld [vmem:[%s185 + $0x30] sm:$0xff]
        %v203 = vld [vmem:[%s185 + $0x38] sm:$0xff]
        %v204 = vld [vmem:[%s185 + $0x40] sm:$0xff]
        %v205 = vld [vmem:[%s185 + $0x48] sm:$0xff]
        %v206 = vld [vmem:[%s1] sm:$0xff]
        %v207 = vld [vmem:[%s1 + $0x8] sm:$0xff]
        %v208 = vld [vmem:[%s1 + $0x10] sm:$0xff]
        %v209 = vld [vmem:[%s1 + $0x18] sm:$0xff]
        %v210 = vld [vmem:[%s2] sm:$0x1]
        %v212 = vlaneseq
        %v213 = vshrl.u32 %v212, 7
        %v214 = vsub.s32 0, %v213
        %v215 = vrot.slane %v210, %v214
        %vm217 = vcmask 261120
        %v219 = vsel %vm217, %v196, 0
        %v222 = vsel %vm217, %v197, 0
        %v225 = vsel %vm217, %v198, 0
        %v228 = vsel %vm217, %v199, 0
        %v231 = vsel %vm217, %v200, 0
        %v234 = vsel %vm217, %v201, 0
        %v237 = vsel %vm217, %v202, 0
        %v240 = vsel %vm217, %v203, 0
        %v243 = vsel %vm217, %v204, 0
        %v246 = vsel %vm217, %v205, 0
        %248 = vmatprep.subr.mxu0 0.0
        %249 = vmatpush1.msra.mxu0 %v206
        %250 = vmatprep.subr.mxu0 0.0
        %251 = vmatpush1.msra.mxu0 %v207
        %252 = vmatprep.subr.mxu0 0.0
        %253 = vmatpush1.msra.mxu0 %v208
        %254 = vmatprep.subr.mxu0 0.0
        %255 = vmatpush1.msra.mxu0 %v209
        %256 = vmatprep.subr.mxu0 0.0
        %257 = vmatpush1.msra.mxu0 0.0
        %258 = vmatprep.subr.mxu0 0.0
        %259 = vmatpush1.msra.mxu0 0.0
        %260 = vmatprep.subr.mxu0 0.0
        %261 = vmatpush1.msra.mxu0 0.0
        %262 = vmatprep.subr.mxu0 0.0
        %263 = vmatpush1.msra.mxu0 0.0
        %264 = vmatprep.subr.mxu0 0.0
        %265 = vmatpush1.msra.mxu0 0.0
        %266 = vmatprep.subr.mxu0 0.0
        %267 = vmatpush1.msra.mxu0 0.0
        %268 = vmatprep.subr.mxu0 0.0
        %269 = vmatpush1.msra.mxu0 0.0
        %270 = vmatprep.subr.mxu0 0.0
        %271 = vmatpush1.msra.mxu0 0.0
        %272 = vmatprep.subr.mxu0 0.0
        %273 = vmatpush1.msra.mxu0 0.0
        %274 = vmatprep.subr.mxu0 0.0
        %275 = vmatpush1.msra.mxu0 0.0
        %276 = vmatprep.subr.mxu0 0.0
        %277 = vmatpush1.msra.mxu0 0.0
        %278 = vmatprep.subr.mxu0 0.0
        %279 = vmatpush1.msra.mxu0 0.0
        %280 = vmatprep.subr.mxu0 0.0
        %281 = vmatpush1.msra.mxu0 0.0
        %282 = vmatprep.subr.mxu0 0.0
        %283 = vmatpush1.msra.mxu0 0.0
        %284 = vmatprep.subr.mxu0 0.0
        %285 = vmatpush1.msra.mxu0 0.0
        %286 = vmatprep.subr.mxu0 0.0
        %287 = vmatpush1.msra.mxu0 0.0
        %288 = vmatprep.subr.mxu0 0.0
        %289 = vmatpush1.msra.mxu0 0.0
        %290 = vmatprep.subr.mxu0 0.0
        %291 = vmatpush1.msra.mxu0 0.0
        %292 = vmatprep.subr.mxu0 0.0
        %293 = vmatpush1.msra.mxu0 0.0
        %294 = vmatprep.subr.mxu0 0.0
        %295 = vmatpush1.msra.mxu0 0.0
        %296 = vmatprep.subr.mxu0 0.0
        %297 = vmatpush1.msra.mxu0 0.0
        %298 = vmatprep.subr.mxu0 0.0
        %299 = vmatpush1.msra.mxu0 0.0
        %300 = vmatprep.subr.mxu0 0.0
        %301 = vmatpush1.msra.mxu0 0.0
        %302 = vmatprep.subr.mxu0 0.0
        %303 = vmatpush1.msra.mxu0 0.0
        %304 = vmatprep.subr.mxu0 0.0
        %305 = vmatpush1.msra.mxu0 0.0
        %306 = vmatprep.subr.mxu0 0.0
        %307 = vmatpush1.msra.mxu0 0.0
        %308 = vmatprep.subr.mxu0 0.0
        %309 = vmatpush1.msra.mxu0 0.0
        %310 = vmatprep.subr.mxu0 0.0
        %311 = vmatpush1.msra.mxu0 0.0
        %312 = vmatprep.mubr.f32.mxu0 0.0
        %313 = vmatmul.mubr.f32.gmra.mrb[0].mxu0 %v219
        %v314 = vpop.f32.mrb[0].mxu0
        %v315 = vadd.f32 %v215, %v314
        %v316 = vpop.f32.mrb[0].mxu0
        %317 = vmatprep.mubr.f32.mxu0 0.0
        %318 = vmatmul.mubr.f32.gmra.mrb[0].mxu0 %v222
        %v319 = vpop.f32.mrb[0].mxu0
        %v320 = vadd.f32 %v215, %v319
        %v321 = vpop.f32.mrb[0].mxu0
        %322 = vmatprep.mubr.f32.mxu0 0.0
        %323 = vmatmul.mubr.f32.gmra.mrb[0].mxu0 %v225
        %v324 = vpop.f32.mrb[0].mxu0
        %v325 = vadd.f32 %v215, %v324
        %v326 = vpop.f32.mrb[0].mxu0
        %327 = vmatprep.mubr.f32.mxu0 0.0
        %328 = vmatmul.mubr.f32.gmra.mrb[0].mxu0 %v228
        %v329 = vpop.f32.mrb[0].mxu0
        %v330 = vadd.f32 %v215, %v329
        %v331 = vpop.f32.mrb[0].mxu0
        %332 = vmatprep.mubr.f32.mxu0 0.0
        %333 = vmatmul.mubr.f32.gmra.mrb[0].mxu0 %v231
        %v334 = vpop.f32.mrb[0].mxu0
        %v335 = vadd.f32 %v215, %v334
        %v336 = vpop.f32.mrb[0].mxu0
        %337 = vmatprep.mubr.f32.mxu0 0.0
        %338 = vmatmul.mubr.f32.gmra.mrb[0].mxu0 %v234
        %v339 = vpop.f32.mrb[0].mxu0
        %v340 = vadd.f32 %v215, %v339
        %v341 = vpop.f32.mrb[0].mxu0
        %342 = vmatprep.mubr.f32.mxu0 0.0
        %343 = vmatmul.mubr.f32.gmra.mrb[0].mxu0 %v237
        %v344 = vpop.f32.mrb[0].mxu0
        %v345 = vadd.f32 %v215, %v344
        %v346 = vpop.f32.mrb[0].mxu0
        %347 = vmatprep.mubr.f32.mxu0 0.0
        %348 = vmatmul.mubr.f32.gmra.mrb[0].mxu0 %v240
        %v349 = vpop.f32.mrb[0].mxu0
        %v350 = vadd.f32 %v215, %v349
        %v351 = vpop.f32.mrb[0].mxu0
        %352 = vmatprep.mubr.f32.mxu0 0.0
        %353 = vmatmul.mubr.f32.gmra.mrb[0].mxu0 %v243
        %v354 = vpop.f32.mrb[0].mxu0
        %v355 = vadd.f32 %v215, %v354
        %v356 = vpop.f32.mrb[0].mxu0
        %357 = vmatprep.mubr.f32.mxu0 0.0
        %358 = vmatmul.mubr.f32.gmra.mrb[0].mxu0 %v246
        %v359 = vpop.f32.mrb[0].mxu0
        %v360 = vadd.f32 %v215, %v359
        %v361 = vpop.f32.mrb[0].mxu0
        %362 = vdwg.mxu0
        %v363 = vmul.f32 %v315, 30.0
        %v364 = vmul.f32 %v320, 30.0
        %v365 = vmul.f32 %v325, 30.0
        %v366 = vmul.f32 %v330, 30.0
        %v367 = vmul.f32 %v335, 30.0
        %v368 = vmul.f32 %v340, 30.0
        %v369 = vmul.f32 %v345, 30.0
        %v370 = vmul.f32 %v350, 30.0
        %v371 = vmul.f32 %v355, 30.0
        %v372 = vmul.f32 %v360, 30.0
        %v373 = vand.u32 2147483647, %v363
        %vm374 = vcmp.le.f32.partialorder %v373, 0.7853982
        %vm375 = vcmp.lt.s32.totalorder %v363, 0
        %v376 = vand.u32 %v363, 2139095040
        %v377 = vshrl.u32 %v376, 23
        %v378 = vsub.s32 %v377, 127
        %v379 = vand.u32 2147483647, %v363
        %v380 = vand.u32 %v379, 8388607
        %v381 = vor.u32 %v380, 8388608
        %v382 = vsub.s32 0, %v381
        %v383 = vadd.s32 %v378, 1
        %vm384 = vcmp.gt.s32.totalorder %v383, 0
        %v385 = vsel %vm384, %v383, 0
        %v386 = vshrl.u32 %v385, 5
        %v387 = vand.u32 %v385, 31
        %v388 = vsub.s32 32, %v387
        %v389 = vshrl.u32 683565275, %v388
        %v390 = vshll.u32 683565275, %v387
        %v391 = vshrl.u32 2475754826, %v388
        %v392 = vor.u32 %v390, %v391
        %v393 = vshll.u32 2475754826, %v387
        %v394 = vshrl.u32 2131351028, %v388
        %v395 = vor.u32 %v393, %v394
        %v396 = vshll.u32 2131351028, %v387
        %v397 = vshrl.u32 2102212464, %v388
        %v398 = vor.u32 %v396, %v397
        %v399 = vshll.u32 2102212464, %v387
        %v400 = vshrl.u32 920167782, %v388
        %v401 = vor.u32 %v399, %v400
        %v402 = vshll.u32 920167782, %v387
        %v403 = vshrl.u32 1326507024, %v388
        %v404 = vor.u32 %v402, %v403
        %vm405 = vcmp.lt.s32.totalorder %v386, 1
        %vm406 = vcmp.lt.s32.totalorder %v386, 2
        %vm407 = vcmp.lt.s32.totalorder %v386, 3
        %vm408 = vcmp.lt.s32.totalorder %v386, 4
        %v409 = vsel %vm405, %v389, %v392
        %v410 = vsel %vm408, %v398, 2102212464
        %v411 = vsel %vm407, %v395, %v410
        %v412 = vsel %vm406, %v409, %v411
        %v413 = vsel %vm405, %v392, %v395
        %v414 = vsel %vm408, %v401, 920167782
        %v415 = vsel %vm407, %v398, %v414
        %v416 = vsel %vm406, %v413, %v415
        %v417 = vsel %vm405, %v395, %v398
        %v418 = vsel %vm408, %v404, 1326507024
        %v419 = vsel %vm407, %v401, %v418
        %v420 = vsel %vm406, %v417, %v419
        %v421 = vshll.u32 %v381, 8
        %v422 = vmul.u32.u64.compose %v421, %v420
        %v423 = vextract.low.u32 %v422
        %v424 = vextract.high.u32 %v422
        %v425 = vmul.u32.u64.compose %v421, %v416
        %v426 = vextract.low.u32 %v425
        %v427 = vextract.high.u32 %v425
        %v428 = vmul.u32 %v421, %v412
        %v429 = vadd.s32 %v424, %v426
        %vm430 = vc.u32 %v424, %v426
        %v431 = vadd.s32 %v427, 1
        %v432 = vsel %vm430, %v431, %v427
        %v433 = vadd.s32 %v428, %v432
        %v434 = vadd.s32 %v433, 536870912
        %v435 = vshrl.u32 %v434, 30
        %v436 = vshll.u32 %v435, 30
        %v437 = vsub.s32 %v433, %v436
        %vm438 = vcmp.lt.s32.totalorder %v437, 0
        %v439 = vsub.s32 0, %v437
        %v440 = vsel %vm438, %v439, %v437
        %v441 = vclz %v440
        %v442 = vsub.s32 %v441, 2
        %vm443 = vcmp.gt.s32.totalorder 0, %v442
        %v444 = vsel %vm443, 0, %v442
        %v445 = vsub.s32 32, %v444
        %v446 = vshll.u32 %v437, %v444
        %v447 = vshrl.u32 %v429, %v445
        %v448 = vor.u32 %v446, %v447
        %v449 = vsub.s32 4294967266, %v444
        %v450 = vadd.s32 %v449, 127
        %v451 = vshll.u32 %v450, 23
        %v452 = vor.u32 4788187, %v451
        %v453 = vand.u32 2147483647, %v452
        %v455 = vcvt.s32.f32 %v448
        %v456 = vmul.f32 %v455, %v453
        %v457 = vxor.u32 %v456, 2147483648
        %v458 = vsel %vm375, %v457, %v456
        %v459 = vsub.s32 4, %v435
        %v460 = vsel %vm375, %v459, %v435
        %v461 = vsel %vm374, %v363, %v458
        %v462 = vsel %vm374, 0, %v460
        %v463 = vcosq.f32.pop %v461
        %v464 = vsinq.f32.pop %v461
        %vm465 = vweird.f32 %v363
        %v466 = vadd.s32 %v462, 3
        %v467 = vand.u32 %v466, 3
        %vm468 = vcmp.lt.s32.totalorder %v467, 2
        %vm469 = vcmp.eq.s32.totalorder %v467, 0
        %v470 = vxor.u32 %v464, 2147483648
        %v471 = vsel %vm469, %v463, %v470
        %vm472 = vcmp.eq.s32.totalorder %v467, 2
        %v473 = vxor.u32 %v463, 2147483648
        %v474 = vsel %vm472, %v473, %v464
        %v475 = vsel %vm468, %v471, %v474
        %v476 = vsel %vm465, nan, %v475
        %v477 = vand.u32 2147483647, %v364
        %vm478 = vcmp.le.f32.partialorder %v477, 0.7853982
        %vm479 = vcmp.lt.s32.totalorder %v364, 0
        %v480 = vand.u32 %v364, 2139095040
        %v481 = vshrl.u32 %v480, 23
        %v482 = vsub.s32 %v481, 127
        %v483 = vand.u32 2147483647, %v364
        %v484 = vand.u32 %v483, 8388607
        %v485 = vor.u32 %v484, 8388608
        %v486 = vsub.s32 0, %v485
        %v487 = vadd.s32 %v482, 1
        %vm488 = vcmp.gt.s32.totalorder %v487, 0
        %v489 = vsel %vm488, %v487, 0
        %v490 = vshrl.u32 %v489, 5
        %v491 = vand.u32 %v489, 31
        %v492 = vsub.s32 32, %v491
        %v493 = vshrl.u32 683565275, %v492
        %v494 = vshll.u32 683565275, %v491
        %v495 = vshrl.u32 2475754826, %v492
        %v496 = vor.u32 %v494, %v495
        %v497 = vshll.u32 2475754826, %v491
        %v498 = vshrl.u32 2131351028, %v492
        %v499 = vor.u32 %v497, %v498
        %v500 = vshll.u32 2131351028, %v491
        %v501 = vshrl.u32 2102212464, %v492
        %v502 = vor.u32 %v500, %v501
        %v503 = vshll.u32 2102212464, %v491
        %v504 = vshrl.u32 920167782, %v492
        %v505 = vor.u32 %v503, %v504
        %v506 = vshll.u32 920167782, %v491
        %v507 = vshrl.u32 1326507024, %v492
        %v508 = vor.u32 %v506, %v507
        %vm509 = vcmp.lt.s32.totalorder %v490, 1
        %vm510 = vcmp.lt.s32.totalorder %v490, 2
        %vm511 = vcmp.lt.s32.totalorder %v490, 3
        %vm512 = vcmp.lt.s32.totalorder %v490, 4
        %v513 = vsel %vm509, %v493, %v496
        %v514 = vsel %vm512, %v502, 2102212464
        %v515 = vsel %vm511, %v499, %v514
        %v516 = vsel %vm510, %v513, %v515
        %v517 = vsel %vm509, %v496, %v499
        %v518 = vsel %vm512, %v505, 920167782
        %v519 = vsel %vm511, %v502, %v518
        %v520 = vsel %vm510, %v517, %v519
        %v521 = vsel %vm509, %v499, %v502
        %v522 = vsel %vm512, %v508, 1326507024
        %v523 = vsel %vm511, %v505, %v522
        %v524 = vsel %vm510, %v521, %v523
        %v525 = vshll.u32 %v485, 8
        %v526 = vmul.u32.u64.compose %v525, %v524
        %v527 = vextract.low.u32 %v526
        %v528 = vextract.high.u32 %v526
        %v529 = vmul.u32.u64.compose %v525, %v520
        %v530 = vextract.low.u32 %v529
        %v531 = vextract.high.u32 %v529
        %v532 = vmul.u32 %v525, %v516
        %v533 = vadd.s32 %v528, %v530
        %vm534 = vc.u32 %v528, %v530
        %v535 = vadd.s32 %v531, 1
        %v536 = vsel %vm534, %v535, %v531
        %v537 = vadd.s32 %v532, %v536
        %v538 = vadd.s32 %v537, 536870912
        %v539 = vshrl.u32 %v538, 30
        %v540 = vshll.u32 %v539, 30
        %v541 = vsub.s32 %v537, %v540
        %vm542 = vcmp.lt.s32.totalorder %v541, 0
        %v543 = vsub.s32 0, %v541
        %v544 = vsel %vm542, %v543, %v541
        %v545 = vclz %v544
        %v546 = vsub.s32 %v545, 2
        %vm547 = vcmp.gt.s32.totalorder 0, %v546
        %v548 = vsel %vm547, 0, %v546
        %v549 = vsub.s32 32, %v548
        %v550 = vshll.u32 %v541, %v548
        %v551 = vshrl.u32 %v533, %v549
        %v552 = vor.u32 %v550, %v551
        %v553 = vsub.s32 4294967266, %v548
        %v554 = vadd.s32 %v553, 127
        %v555 = vshll.u32 %v554, 23
        %v556 = vor.u32 4788187, %v555
        %v557 = vand.u32 2147483647, %v556
        %v559 = vcvt.s32.f32 %v552
        %v560 = vmul.f32 %v559, %v557
        %v561 = vxor.u32 %v560, 2147483648
        %v562 = vsel %vm479, %v561, %v560
        %v563 = vsub.s32 4, %v539
        %v564 = vsel %vm479, %v563, %v539
        %v565 = vsel %vm478, %v364, %v562
        %v566 = vsel %vm478, 0, %v564
        %v567 = vcosq.f32.pop %v565
        %v568 = vsinq.f32.pop %v565
        %vm569 = vweird.f32 %v364
        %v570 = vadd.s32 %v566, 3
        %v571 = vand.u32 %v570, 3
        %vm572 = vcmp.lt.s32.totalorder %v571, 2
        %vm573 = vcmp.eq.s32.totalorder %v571, 0
        %v574 = vxor.u32 %v568, 2147483648
        %v575 = vsel %vm573, %v567, %v574
        %vm576 = vcmp.eq.s32.totalorder %v571, 2
        %v577 = vxor.u32 %v567, 2147483648
        %v578 = vsel %vm576, %v577, %v568
        %v579 = vsel %vm572, %v575, %v578
        %v580 = vsel %vm569, nan, %v579
        %v581 = vand.u32 2147483647, %v365
        %vm582 = vcmp.le.f32.partialorder %v581, 0.7853982
        %vm583 = vcmp.lt.s32.totalorder %v365, 0
        %v584 = vand.u32 %v365, 2139095040
        %v585 = vshrl.u32 %v584, 23
        %v586 = vsub.s32 %v585, 127
        %v587 = vand.u32 2147483647, %v365
        %v588 = vand.u32 %v587, 8388607
        %v589 = vor.u32 %v588, 8388608
        %v590 = vsub.s32 0, %v589
        %v591 = vadd.s32 %v586, 1
        %vm592 = vcmp.gt.s32.totalorder %v591, 0
        %v593 = vsel %vm592, %v591, 0
        %v594 = vshrl.u32 %v593, 5
        %v595 = vand.u32 %v593, 31
        %v596 = vsub.s32 32, %v595
        %v597 = vshrl.u32 683565275, %v596
        %v598 = vshll.u32 683565275, %v595
        %v599 = vshrl.u32 2475754826, %v596
        %v600 = vor.u32 %v598, %v599
        %v601 = vshll.u32 2475754826, %v595
        %v602 = vshrl.u32 2131351028, %v596
        %v603 = vor.u32 %v601, %v602
        %v604 = vshll.u32 2131351028, %v595
        %v605 = vshrl.u32 2102212464, %v596
        %v606 = vor.u32 %v604, %v605
        %v607 = vshll.u32 2102212464, %v595
        %v608 = vshrl.u32 920167782, %v596
        %v609 = vor.u32 %v607, %v608
        %v610 = vshll.u32 920167782, %v595
        %v611 = vshrl.u32 1326507024, %v596
        %v612 = vor.u32 %v610, %v611
        %vm613 = vcmp.lt.s32.totalorder %v594, 1
        %vm614 = vcmp.lt.s32.totalorder %v594, 2
        %vm615 = vcmp.lt.s32.totalorder %v594, 3
        %vm616 = vcmp.lt.s32.totalorder %v594, 4
        %v617 = vsel %vm613, %v597, %v600
        %v618 = vsel %vm616, %v606, 2102212464
        %v619 = vsel %vm615, %v603, %v618
        %v620 = vsel %vm614, %v617, %v619
        %v621 = vsel %vm613, %v600, %v603
        %v622 = vsel %vm616, %v609, 920167782
        %v623 = vsel %vm615, %v606, %v622
        %v624 = vsel %vm614, %v621, %v623
        %v625 = vsel %vm613, %v603, %v606
        %v626 = vsel %vm616, %v612, 1326507024
        %v627 = vsel %vm615, %v609, %v626
        %v628 = vsel %vm614, %v625, %v627
        %v629 = vshll.u32 %v589, 8
        %v630 = vmul.u32.u64.compose %v629, %v628
        %v631 = vextract.low.u32 %v630
        %v632 = vextract.high.u32 %v630
        %v633 = vmul.u32.u64.compose %v629, %v624
        %v634 = vextract.low.u32 %v633
        %v635 = vextract.high.u32 %v633
        %v636 = vmul.u32 %v629, %v620
        %v637 = vadd.s32 %v632, %v634
        %vm638 = vc.u32 %v632, %v634
        %v639 = vadd.s32 %v635, 1
        %v640 = vsel %vm638, %v639, %v635
        %v641 = vadd.s32 %v636, %v640
        %v642 = vadd.s32 %v641, 536870912
        %v643 = vshrl.u32 %v642, 30
        %v644 = vshll.u32 %v643, 30
        %v645 = vsub.s32 %v641, %v644
        %vm646 = vcmp.lt.s32.totalorder %v645, 0
        %v647 = vsub.s32 0, %v645
        %v648 = vsel %vm646, %v647, %v645
        %v649 = vclz %v648
        %v650 = vsub.s32 %v649, 2
        %vm651 = vcmp.gt.s32.totalorder 0, %v650
        %v652 = vsel %vm651, 0, %v650
        %v653 = vsub.s32 32, %v652
        %v654 = vshll.u32 %v645, %v652
        %v655 = vshrl.u32 %v637, %v653
        %v656 = vor.u32 %v654, %v655
        %v657 = vsub.s32 4294967266, %v652
        %v658 = vadd.s32 %v657, 127
        %v659 = vshll.u32 %v658, 23
        %v660 = vor.u32 4788187, %v659
        %v661 = vand.u32 2147483647, %v660
        %v663 = vcvt.s32.f32 %v656
        %v664 = vmul.f32 %v663, %v661
        %v665 = vxor.u32 %v664, 2147483648
        %v666 = vsel %vm583, %v665, %v664
        %v667 = vsub.s32 4, %v643
        %v668 = vsel %vm583, %v667, %v643
        %v669 = vsel %vm582, %v365, %v666
        %v670 = vsel %vm582, 0, %v668
        %v671 = vcosq.f32.pop %v669
        %v672 = vsinq.f32.pop %v669
        %vm673 = vweird.f32 %v365
        %v674 = vadd.s32 %v670, 3
        %v675 = vand.u32 %v674, 3
        %vm676 = vcmp.lt.s32.totalorder %v675, 2
        %vm677 = vcmp.eq.s32.totalorder %v675, 0
        %v678 = vxor.u32 %v672, 2147483648
        %v679 = vsel %vm677, %v671, %v678
        %vm680 = vcmp.eq.s32.totalorder %v675, 2
        %v681 = vxor.u32 %v671, 2147483648
        %v682 = vsel %vm680, %v681, %v672
        %v683 = vsel %vm676, %v679, %v682
        %v684 = vsel %vm673, nan, %v683
        %v685 = vand.u32 2147483647, %v366
        %vm686 = vcmp.le.f32.partialorder %v685, 0.7853982
        %vm687 = vcmp.lt.s32.totalorder %v366, 0
        %v688 = vand.u32 %v366, 2139095040
        %v689 = vshrl.u32 %v688, 23
        %v690 = vsub.s32 %v689, 127
        %v691 = vand.u32 2147483647, %v366
        %v692 = vand.u32 %v691, 8388607
        %v693 = vor.u32 %v692, 8388608
        %v694 = vsub.s32 0, %v693
        %v695 = vadd.s32 %v690, 1
        %vm696 = vcmp.gt.s32.totalorder %v695, 0
        %v697 = vsel %vm696, %v695, 0
        %v698 = vshrl.u32 %v697, 5
        %v699 = vand.u32 %v697, 31
        %v700 = vsub.s32 32, %v699
        %v701 = vshrl.u32 683565275, %v700
        %v702 = vshll.u32 683565275, %v699
        %v703 = vshrl.u32 2475754826, %v700
        %v704 = vor.u32 %v702, %v703
        %v705 = vshll.u32 2475754826, %v699
        %v706 = vshrl.u32 2131351028, %v700
        %v707 = vor.u32 %v705, %v706
        %v708 = vshll.u32 2131351028, %v699
        %v709 = vshrl.u32 2102212464, %v700
        %v710 = vor.u32 %v708, %v709
        %v711 = vshll.u32 2102212464, %v699
        %v712 = vshrl.u32 920167782, %v700
        %v713 = vor.u32 %v711, %v712
        %v714 = vshll.u32 920167782, %v699
        %v715 = vshrl.u32 1326507024, %v700
        %v716 = vor.u32 %v714, %v715
        %vm717 = vcmp.lt.s32.totalorder %v698, 1
        %vm718 = vcmp.lt.s32.totalorder %v698, 2
        %vm719 = vcmp.lt.s32.totalorder %v698, 3
        %vm720 = vcmp.lt.s32.totalorder %v698, 4
        %v721 = vsel %vm717, %v701, %v704
        %v722 = vsel %vm720, %v710, 2102212464
        %v723 = vsel %vm719, %v707, %v722
        %v724 = vsel %vm718, %v721, %v723
        %v725 = vsel %vm717, %v704, %v707
        %v726 = vsel %vm720, %v713, 920167782
        %v727 = vsel %vm719, %v710, %v726
        %v728 = vsel %vm718, %v725, %v727
        %v729 = vsel %vm717, %v707, %v710
        %v730 = vsel %vm720, %v716, 1326507024
        %v731 = vsel %vm719, %v713, %v730
        %v732 = vsel %vm718, %v729, %v731
        %v733 = vshll.u32 %v693, 8
        %v734 = vmul.u32.u64.compose %v733, %v732
        %v735 = vextract.low.u32 %v734
        %v736 = vextract.high.u32 %v734
        %v737 = vmul.u32.u64.compose %v733, %v728
        %v738 = vextract.low.u32 %v737
        %v739 = vextract.high.u32 %v737
        %v740 = vmul.u32 %v733, %v724
        %v741 = vadd.s32 %v736, %v738
        %vm742 = vc.u32 %v736, %v738
        %v743 = vadd.s32 %v739, 1
        %v744 = vsel %vm742, %v743, %v739
        %v745 = vadd.s32 %v740, %v744
        %v746 = vadd.s32 %v745, 536870912
        %v747 = vshrl.u32 %v746, 30
        %v748 = vshll.u32 %v747, 30
        %v749 = vsub.s32 %v745, %v748
        %vm750 = vcmp.lt.s32.totalorder %v749, 0
        %v751 = vsub.s32 0, %v749
        %v752 = vsel %vm750, %v751, %v749
        %v753 = vclz %v752
        %v754 = vsub.s32 %v753, 2
        %vm755 = vcmp.gt.s32.totalorder 0, %v754
        %v756 = vsel %vm755, 0, %v754
        %v757 = vsub.s32 32, %v756
        %v758 = vshll.u32 %v749, %v756
        %v759 = vshrl.u32 %v741, %v757
        %v760 = vor.u32 %v758, %v759
        %v761 = vsub.s32 4294967266, %v756
        %v762 = vadd.s32 %v761, 127
        %v763 = vshll.u32 %v762, 23
        %v764 = vor.u32 4788187, %v763
        %v765 = vand.u32 2147483647, %v764
        %v767 = vcvt.s32.f32 %v760
        %v768 = vmul.f32 %v767, %v765
        %v769 = vxor.u32 %v768, 2147483648
        %v770 = vsel %vm687, %v769, %v768
        %v771 = vsub.s32 4, %v747
        %v772 = vsel %vm687, %v771, %v747
        %v773 = vsel %vm686, %v366, %v770
        %v774 = vsel %vm686, 0, %v772
        %v775 = vcosq.f32.pop %v773
        %v776 = vsinq.f32.pop %v773
        %vm777 = vweird.f32 %v366
        %v778 = vadd.s32 %v774, 3
        %v779 = vand.u32 %v778, 3
        %vm780 = vcmp.lt.s32.totalorder %v779, 2
        %vm781 = vcmp.eq.s32.totalorder %v779, 0
        %v782 = vxor.u32 %v776, 2147483648
        %v783 = vsel %vm781, %v775, %v782
        %vm784 = vcmp.eq.s32.totalorder %v779, 2
        %v785 = vxor.u32 %v775, 2147483648
        %v786 = vsel %vm784, %v785, %v776
        %v787 = vsel %vm780, %v783, %v786
        %v788 = vsel %vm777, nan, %v787
        %v789 = vand.u32 2147483647, %v367
        %vm790 = vcmp.le.f32.partialorder %v789, 0.7853982
        %vm791 = vcmp.lt.s32.totalorder %v367, 0
        %v792 = vand.u32 %v367, 2139095040
        %v793 = vshrl.u32 %v792, 23
        %v794 = vsub.s32 %v793, 127
        %v795 = vand.u32 2147483647, %v367
        %v796 = vand.u32 %v795, 8388607
        %v797 = vor.u32 %v796, 8388608
        %v798 = vsub.s32 0, %v797
        %v799 = vadd.s32 %v794, 1
        %vm800 = vcmp.gt.s32.totalorder %v799, 0
        %v801 = vsel %vm800, %v799, 0
        %v802 = vshrl.u32 %v801, 5
        %v803 = vand.u32 %v801, 31
        %v804 = vsub.s32 32, %v803
        %v805 = vshrl.u32 683565275, %v804
        %v806 = vshll.u32 683565275, %v803
        %v807 = vshrl.u32 2475754826, %v804
        %v808 = vor.u32 %v806, %v807
        %v809 = vshll.u32 2475754826, %v803
        %v810 = vshrl.u32 2131351028, %v804
        %v811 = vor.u32 %v809, %v810
        %v812 = vshll.u32 2131351028, %v803
        %v813 = vshrl.u32 2102212464, %v804
        %v814 = vor.u32 %v812, %v813
        %v815 = vshll.u32 2102212464, %v803
        %v816 = vshrl.u32 920167782, %v804
        %v817 = vor.u32 %v815, %v816
        %v818 = vshll.u32 920167782, %v803
        %v819 = vshrl.u32 1326507024, %v804
        %v820 = vor.u32 %v818, %v819
        %vm821 = vcmp.lt.s32.totalorder %v802, 1
        %vm822 = vcmp.lt.s32.totalorder %v802, 2
        %vm823 = vcmp.lt.s32.totalorder %v802, 3
        %vm824 = vcmp.lt.s32.totalorder %v802, 4
        %v825 = vsel %vm821, %v805, %v808
        %v826 = vsel %vm824, %v814, 2102212464
        %v827 = vsel %vm823, %v811, %v826
        %v828 = vsel %vm822, %v825, %v827
        %v829 = vsel %vm821, %v808, %v811
        %v830 = vsel %vm824, %v817, 920167782
        %v831 = vsel %vm823, %v814, %v830
        %v832 = vsel %vm822, %v829, %v831
        %v833 = vsel %vm821, %v811, %v814
        %v834 = vsel %vm824, %v820, 1326507024
        %v835 = vsel %vm823, %v817, %v834
        %v836 = vsel %vm822, %v833, %v835
        %v837 = vshll.u32 %v797, 8
        %v838 = vmul.u32.u64.compose %v837, %v836
        %v839 = vextract.low.u32 %v838
        %v840 = vextract.high.u32 %v838
        %v841 = vmul.u32.u64.compose %v837, %v832
        %v842 = vextract.low.u32 %v841
        %v843 = vextract.high.u32 %v841
        %v844 = vmul.u32 %v837, %v828
        %v845 = vadd.s32 %v840, %v842
        %vm846 = vc.u32 %v840, %v842
        %v847 = vadd.s32 %v843, 1
        %v848 = vsel %vm846, %v847, %v843
        %v849 = vadd.s32 %v844, %v848
        %v850 = vadd.s32 %v849, 536870912
        %v851 = vshrl.u32 %v850, 30
        %v852 = vshll.u32 %v851, 30
        %v853 = vsub.s32 %v849, %v852
        %vm854 = vcmp.lt.s32.totalorder %v853, 0
        %v855 = vsub.s32 0, %v853
        %v856 = vsel %vm854, %v855, %v853
        %v857 = vclz %v856
        %v858 = vsub.s32 %v857, 2
        %vm859 = vcmp.gt.s32.totalorder 0, %v858
        %v860 = vsel %vm859, 0, %v858
        %v861 = vsub.s32 32, %v860
        %v862 = vshll.u32 %v853, %v860
        %v863 = vshrl.u32 %v845, %v861
        %v864 = vor.u32 %v862, %v863
        %v865 = vsub.s32 4294967266, %v860
        %v866 = vadd.s32 %v865, 127
        %v867 = vshll.u32 %v866, 23
        %v868 = vor.u32 4788187, %v867
        %v869 = vand.u32 2147483647, %v868
        %v871 = vcvt.s32.f32 %v864
        %v872 = vmul.f32 %v871, %v869
        %v873 = vxor.u32 %v872, 2147483648
        %v874 = vsel %vm791, %v873, %v872
        %v875 = vsub.s32 4, %v851
        %v876 = vsel %vm791, %v875, %v851
        %v877 = vsel %vm790, %v367, %v874
        %v878 = vsel %vm790, 0, %v876
        %v879 = vcosq.f32.pop %v877
        %v880 = vsinq.f32.pop %v877
        %vm881 = vweird.f32 %v367
        %v882 = vadd.s32 %v878, 3
        %v883 = vand.u32 %v882, 3
        %vm884 = vcmp.lt.s32.totalorder %v883, 2
        %vm885 = vcmp.eq.s32.totalorder %v883, 0
        %v886 = vxor.u32 %v880, 2147483648
        %v887 = vsel %vm885, %v879, %v886
        %vm888 = vcmp.eq.s32.totalorder %v883, 2
        %v889 = vxor.u32 %v879, 2147483648
        %v890 = vsel %vm888, %v889, %v880
        %v891 = vsel %vm884, %v887, %v890
        %v892 = vsel %vm881, nan, %v891
        %v893 = vand.u32 2147483647, %v368
        %vm894 = vcmp.le.f32.partialorder %v893, 0.7853982
        %vm895 = vcmp.lt.s32.totalorder %v368, 0
        %v896 = vand.u32 %v368, 2139095040
        %v897 = vshrl.u32 %v896, 23
        %v898 = vsub.s32 %v897, 127
        %v899 = vand.u32 2147483647, %v368
        %v900 = vand.u32 %v899, 8388607
        %v901 = vor.u32 %v900, 8388608
        %v902 = vsub.s32 0, %v901
        %v903 = vadd.s32 %v898, 1
        %vm904 = vcmp.gt.s32.totalorder %v903, 0
        %v905 = vsel %vm904, %v903, 0
        %v906 = vshrl.u32 %v905, 5
        %v907 = vand.u32 %v905, 31
        %v908 = vsub.s32 32, %v907
        %v909 = vshrl.u32 683565275, %v908
        %v910 = vshll.u32 683565275, %v907
        %v911 = vshrl.u32 2475754826, %v908
        %v912 = vor.u32 %v910, %v911
        %v913 = vshll.u32 2475754826, %v907
        %v914 = vshrl.u32 2131351028, %v908
        %v915 = vor.u32 %v913, %v914
        %v916 = vshll.u32 2131351028, %v907
        %v917 = vshrl.u32 2102212464, %v908
        %v918 = vor.u32 %v916, %v917
        %v919 = vshll.u32 2102212464, %v907
        %v920 = vshrl.u32 920167782, %v908
        %v921 = vor.u32 %v919, %v920
        %v922 = vshll.u32 920167782, %v907
        %v923 = vshrl.u32 1326507024, %v908
        %v924 = vor.u32 %v922, %v923
        %vm925 = vcmp.lt.s32.totalorder %v906, 1
        %vm926 = vcmp.lt.s32.totalorder %v906, 2
        %vm927 = vcmp.lt.s32.totalorder %v906, 3
        %vm928 = vcmp.lt.s32.totalorder %v906, 4
        %v929 = vsel %vm925, %v909, %v912
        %v930 = vsel %vm928, %v918, 2102212464
        %v931 = vsel %vm927, %v915, %v930
        %v932 = vsel %vm926, %v929, %v931
        %v933 = vsel %vm925, %v912, %v915
        %v934 = vsel %vm928, %v921, 920167782
        %v935 = vsel %vm927, %v918, %v934
        %v936 = vsel %vm926, %v933, %v935
        %v937 = vsel %vm925, %v915, %v918
        %v938 = vsel %vm928, %v924, 1326507024
        %v939 = vsel %vm927, %v921, %v938
        %v940 = vsel %vm926, %v937, %v939
        %v941 = vshll.u32 %v901, 8
        %v942 = vmul.u32.u64.compose %v941, %v940
        %v943 = vextract.low.u32 %v942
        %v944 = vextract.high.u32 %v942
        %v945 = vmul.u32.u64.compose %v941, %v936
        %v946 = vextract.low.u32 %v945
        %v947 = vextract.high.u32 %v945
        %v948 = vmul.u32 %v941, %v932
        %v949 = vadd.s32 %v944, %v946
        %vm950 = vc.u32 %v944, %v946
        %v951 = vadd.s32 %v947, 1
        %v952 = vsel %vm950, %v951, %v947
        %v953 = vadd.s32 %v948, %v952
        %v954 = vadd.s32 %v953, 536870912
        %v955 = vshrl.u32 %v954, 30
        %v956 = vshll.u32 %v955, 30
        %v957 = vsub.s32 %v953, %v956
        %vm958 = vcmp.lt.s32.totalorder %v957, 0
        %v959 = vsub.s32 0, %v957
        %v960 = vsel %vm958, %v959, %v957
        %v961 = vclz %v960
        %v962 = vsub.s32 %v961, 2
        %vm963 = vcmp.gt.s32.totalorder 0, %v962
        %v964 = vsel %vm963, 0, %v962
        %v965 = vsub.s32 32, %v964
        %v966 = vshll.u32 %v957, %v964
        %v967 = vshrl.u32 %v949, %v965
        %v968 = vor.u32 %v966, %v967
        %v969 = vsub.s32 4294967266, %v964
        %v970 = vadd.s32 %v969, 127
        %v971 = vshll.u32 %v970, 23
        %v972 = vor.u32 4788187, %v971
        %v973 = vand.u32 2147483647, %v972
        %v975 = vcvt.s32.f32 %v968
        %v976 = vmul.f32 %v975, %v973
        %v977 = vxor.u32 %v976, 2147483648
        %v978 = vsel %vm895, %v977, %v976
        %v979 = vsub.s32 4, %v955
        %v980 = vsel %vm895, %v979, %v955
        %v981 = vsel %vm894, %v368, %v978
        %v982 = vsel %vm894, 0, %v980
        %v983 = vcosq.f32.pop %v981
        %v984 = vsinq.f32.pop %v981
        %vm985 = vweird.f32 %v368
        %v986 = vadd.s32 %v982, 3
        %v987 = vand.u32 %v986, 3
        %vm988 = vcmp.lt.s32.totalorder %v987, 2
        %vm989 = vcmp.eq.s32.totalorder %v987, 0
        %v990 = vxor.u32 %v984, 2147483648
        %v991 = vsel %vm989, %v983, %v990
        %vm992 = vcmp.eq.s32.totalorder %v987, 2
        %v993 = vxor.u32 %v983, 2147483648
        %v994 = vsel %vm992, %v993, %v984
        %v995 = vsel %vm988, %v991, %v994
        %v996 = vsel %vm985, nan, %v995
        %v997 = vand.u32 2147483647, %v369
        %vm998 = vcmp.le.f32.partialorder %v997, 0.7853982
        %vm999 = vcmp.lt.s32.totalorder %v369, 0
        %v1000 = vand.u32 %v369, 2139095040
        %v1001 = vshrl.u32 %v1000, 23
        %v1002 = vsub.s32 %v1001, 127
        %v1003 = vand.u32 2147483647, %v369
        %v1004 = vand.u32 %v1003, 8388607
        %v1005 = vor.u32 %v1004, 8388608
        %v1006 = vsub.s32 0, %v1005
        %v1007 = vadd.s32 %v1002, 1
        %vm1008 = vcmp.gt.s32.totalorder %v1007, 0
        %v1009 = vsel %vm1008, %v1007, 0
        %v1010 = vshrl.u32 %v1009, 5
        %v1011 = vand.u32 %v1009, 31
        %v1012 = vsub.s32 32, %v1011
        %v1013 = vshrl.u32 683565275, %v1012
        %v1014 = vshll.u32 683565275, %v1011
        %v1015 = vshrl.u32 2475754826, %v1012
        %v1016 = vor.u32 %v1014, %v1015
        %v1017 = vshll.u32 2475754826, %v1011
        %v1018 = vshrl.u32 2131351028, %v1012
        %v1019 = vor.u32 %v1017, %v1018
        %v1020 = vshll.u32 2131351028, %v1011
        %v1021 = vshrl.u32 2102212464, %v1012
        %v1022 = vor.u32 %v1020, %v1021
        %v1023 = vshll.u32 2102212464, %v1011
        %v1024 = vshrl.u32 920167782, %v1012
        %v1025 = vor.u32 %v1023, %v1024
        %v1026 = vshll.u32 920167782, %v1011
        %v1027 = vshrl.u32 1326507024, %v1012
        %v1028 = vor.u32 %v1026, %v1027
        %vm1029 = vcmp.lt.s32.totalorder %v1010, 1
        %vm1030 = vcmp.lt.s32.totalorder %v1010, 2
        %vm1031 = vcmp.lt.s32.totalorder %v1010, 3
        %vm1032 = vcmp.lt.s32.totalorder %v1010, 4
        %v1033 = vsel %vm1029, %v1013, %v1016
        %v1034 = vsel %vm1032, %v1022, 2102212464
        %v1035 = vsel %vm1031, %v1019, %v1034
        %v1036 = vsel %vm1030, %v1033, %v1035
        %v1037 = vsel %vm1029, %v1016, %v1019
        %v1038 = vsel %vm1032, %v1025, 920167782
        %v1039 = vsel %vm1031, %v1022, %v1038
        %v1040 = vsel %vm1030, %v1037, %v1039
        %v1041 = vsel %vm1029, %v1019, %v1022
        %v1042 = vsel %vm1032, %v1028, 1326507024
        %v1043 = vsel %vm1031, %v1025, %v1042
        %v1044 = vsel %vm1030, %v1041, %v1043
        %v1045 = vshll.u32 %v1005, 8
        %v1046 = vmul.u32.u64.compose %v1045, %v1044
        %v1047 = vextract.low.u32 %v1046
        %v1048 = vextract.high.u32 %v1046
        %v1049 = vmul.u32.u64.compose %v1045, %v1040
        %v1050 = vextract.low.u32 %v1049
        %v1051 = vextract.high.u32 %v1049
        %v1052 = vmul.u32 %v1045, %v1036
        %v1053 = vadd.s32 %v1048, %v1050
        %vm1054 = vc.u32 %v1048, %v1050
        %v1055 = vadd.s32 %v1051, 1
        %v1056 = vsel %vm1054, %v1055, %v1051
        %v1057 = vadd.s32 %v1052, %v1056
        %v1058 = vadd.s32 %v1057, 536870912
        %v1059 = vshrl.u32 %v1058, 30
        %v1060 = vshll.u32 %v1059, 30
        %v1061 = vsub.s32 %v1057, %v1060
        %vm1062 = vcmp.lt.s32.totalorder %v1061, 0
        %v1063 = vsub.s32 0, %v1061
        %v1064 = vsel %vm1062, %v1063, %v1061
        %v1065 = vclz %v1064
        %v1066 = vsub.s32 %v1065, 2
        %vm1067 = vcmp.gt.s32.totalorder 0, %v1066
        %v1068 = vsel %vm1067, 0, %v1066
        %v1069 = vsub.s32 32, %v1068
        %v1070 = vshll.u32 %v1061, %v1068
        %v1071 = vshrl.u32 %v1053, %v1069
        %v1072 = vor.u32 %v1070, %v1071
        %v1073 = vsub.s32 4294967266, %v1068
        %v1074 = vadd.s32 %v1073, 127
        %v1075 = vshll.u32 %v1074, 23
        %v1076 = vor.u32 4788187, %v1075
        %v1077 = vand.u32 2147483647, %v1076
        %v1079 = vcvt.s32.f32 %v1072
        %v1080 = vmul.f32 %v1079, %v1077
        %v1081 = vxor.u32 %v1080, 2147483648
        %v1082 = vsel %vm999, %v1081, %v1080
        %v1083 = vsub.s32 4, %v1059
        %v1084 = vsel %vm999, %v1083, %v1059
        %v1085 = vsel %vm998, %v369, %v1082
        %v1086 = vsel %vm998, 0, %v1084
        %v1087 = vcosq.f32.pop %v1085
        %v1088 = vsinq.f32.pop %v1085
        %vm1089 = vweird.f32 %v369
        %v1090 = vadd.s32 %v1086, 3
        %v1091 = vand.u32 %v1090, 3
        %vm1092 = vcmp.lt.s32.totalorder %v1091, 2
        %vm1093 = vcmp.eq.s32.totalorder %v1091, 0
        %v1094 = vxor.u32 %v1088, 2147483648
        %v1095 = vsel %vm1093, %v1087, %v1094
        %vm1096 = vcmp.eq.s32.totalorder %v1091, 2
        %v1097 = vxor.u32 %v1087, 2147483648
        %v1098 = vsel %vm1096, %v1097, %v1088
        %v1099 = vsel %vm1092, %v1095, %v1098
        %v1100 = vsel %vm1089, nan, %v1099
        %v1101 = vand.u32 2147483647, %v370
        %vm1102 = vcmp.le.f32.partialorder %v1101, 0.7853982
        %vm1103 = vcmp.lt.s32.totalorder %v370, 0
        %v1104 = vand.u32 %v370, 2139095040
        %v1105 = vshrl.u32 %v1104, 23
        %v1106 = vsub.s32 %v1105, 127
        %v1107 = vand.u32 2147483647, %v370
        %v1108 = vand.u32 %v1107, 8388607
        %v1109 = vor.u32 %v1108, 8388608
        %v1110 = vsub.s32 0, %v1109
        %v1111 = vadd.s32 %v1106, 1
        %vm1112 = vcmp.gt.s32.totalorder %v1111, 0
        %v1113 = vsel %vm1112, %v1111, 0
        %v1114 = vshrl.u32 %v1113, 5
        %v1115 = vand.u32 %v1113, 31
        %v1116 = vsub.s32 32, %v1115
        %v1117 = vshrl.u32 683565275, %v1116
        %v1118 = vshll.u32 683565275, %v1115
        %v1119 = vshrl.u32 2475754826, %v1116
        %v1120 = vor.u32 %v1118, %v1119
        %v1121 = vshll.u32 2475754826, %v1115
        %v1122 = vshrl.u32 2131351028, %v1116
        %v1123 = vor.u32 %v1121, %v1122
        %v1124 = vshll.u32 2131351028, %v1115
        %v1125 = vshrl.u32 2102212464, %v1116
        %v1126 = vor.u32 %v1124, %v1125
        %v1127 = vshll.u32 2102212464, %v1115
        %v1128 = vshrl.u32 920167782, %v1116
        %v1129 = vor.u32 %v1127, %v1128
        %v1130 = vshll.u32 920167782, %v1115
        %v1131 = vshrl.u32 1326507024, %v1116
        %v1132 = vor.u32 %v1130, %v1131
        %vm1133 = vcmp.lt.s32.totalorder %v1114, 1
        %vm1134 = vcmp.lt.s32.totalorder %v1114, 2
        %vm1135 = vcmp.lt.s32.totalorder %v1114, 3
        %vm1136 = vcmp.lt.s32.totalorder %v1114, 4
        %v1137 = vsel %vm1133, %v1117, %v1120
        %v1138 = vsel %vm1136, %v1126, 2102212464
        %v1139 = vsel %vm1135, %v1123, %v1138
        %v1140 = vsel %vm1134, %v1137, %v1139
        %v1141 = vsel %vm1133, %v1120, %v1123
        %v1142 = vsel %vm1136, %v1129, 920167782
        %v1143 = vsel %vm1135, %v1126, %v1142
        %v1144 = vsel %vm1134, %v1141, %v1143
        %v1145 = vsel %vm1133, %v1123, %v1126
        %v1146 = vsel %vm1136, %v1132, 1326507024
        %v1147 = vsel %vm1135, %v1129, %v1146
        %v1148 = vsel %vm1134, %v1145, %v1147
        %v1149 = vshll.u32 %v1109, 8
        %v1150 = vmul.u32.u64.compose %v1149, %v1148
        %v1151 = vextract.low.u32 %v1150
        %v1152 = vextract.high.u32 %v1150
        %v1153 = vmul.u32.u64.compose %v1149, %v1144
        %v1154 = vextract.low.u32 %v1153
        %v1155 = vextract.high.u32 %v1153
        %v1156 = vmul.u32 %v1149, %v1140
        %v1157 = vadd.s32 %v1152, %v1154
        %vm1158 = vc.u32 %v1152, %v1154
        %v1159 = vadd.s32 %v1155, 1
        %v1160 = vsel %vm1158, %v1159, %v1155
        %v1161 = vadd.s32 %v1156, %v1160
        %v1162 = vadd.s32 %v1161, 536870912
        %v1163 = vshrl.u32 %v1162, 30
        %v1164 = vshll.u32 %v1163, 30
        %v1165 = vsub.s32 %v1161, %v1164
        %vm1166 = vcmp.lt.s32.totalorder %v1165, 0
        %v1167 = vsub.s32 0, %v1165
        %v1168 = vsel %vm1166, %v1167, %v1165
        %v1169 = vclz %v1168
        %v1170 = vsub.s32 %v1169, 2
        %vm1171 = vcmp.gt.s32.totalorder 0, %v1170
        %v1172 = vsel %vm1171, 0, %v1170
        %v1173 = vsub.s32 32, %v1172
        %v1174 = vshll.u32 %v1165, %v1172
        %v1175 = vshrl.u32 %v1157, %v1173
        %v1176 = vor.u32 %v1174, %v1175
        %v1177 = vsub.s32 4294967266, %v1172
        %v1178 = vadd.s32 %v1177, 127
        %v1179 = vshll.u32 %v1178, 23
        %v1180 = vor.u32 4788187, %v1179
        %v1181 = vand.u32 2147483647, %v1180
        %v1183 = vcvt.s32.f32 %v1176
        %v1184 = vmul.f32 %v1183, %v1181
        %v1185 = vxor.u32 %v1184, 2147483648
        %v1186 = vsel %vm1103, %v1185, %v1184
        %v1187 = vsub.s32 4, %v1163
        %v1188 = vsel %vm1103, %v1187, %v1163
        %v1189 = vsel %vm1102, %v370, %v1186
        %v1190 = vsel %vm1102, 0, %v1188
        %v1191 = vcosq.f32.pop %v1189
        %v1192 = vsinq.f32.pop %v1189
        %vm1193 = vweird.f32 %v370
        %v1194 = vadd.s32 %v1190, 3
        %v1195 = vand.u32 %v1194, 3
        %vm1196 = vcmp.lt.s32.totalorder %v1195, 2
        %vm1197 = vcmp.eq.s32.totalorder %v1195, 0
        %v1198 = vxor.u32 %v1192, 2147483648
        %v1199 = vsel %vm1197, %v1191, %v1198
        %vm1200 = vcmp.eq.s32.totalorder %v1195, 2
        %v1201 = vxor.u32 %v1191, 2147483648
        %v1202 = vsel %vm1200, %v1201, %v1192
        %v1203 = vsel %vm1196, %v1199, %v1202
        %v1204 = vsel %vm1193, nan, %v1203
        %v1205 = vand.u32 2147483647, %v371
        %vm1206 = vcmp.le.f32.partialorder %v1205, 0.7853982
        %vm1207 = vcmp.lt.s32.totalorder %v371, 0
        %v1208 = vand.u32 %v371, 2139095040
        %v1209 = vshrl.u32 %v1208, 23
        %v1210 = vsub.s32 %v1209, 127
        %v1211 = vand.u32 2147483647, %v371
        %v1212 = vand.u32 %v1211, 8388607
        %v1213 = vor.u32 %v1212, 8388608
        %v1214 = vsub.s32 0, %v1213
        %v1215 = vadd.s32 %v1210, 1
        %vm1216 = vcmp.gt.s32.totalorder %v1215, 0
        %v1217 = vsel %vm1216, %v1215, 0
        %v1218 = vshrl.u32 %v1217, 5
        %v1219 = vand.u32 %v1217, 31
        %v1220 = vsub.s32 32, %v1219
        %v1221 = vshrl.u32 683565275, %v1220
        %v1222 = vshll.u32 683565275, %v1219
        %v1223 = vshrl.u32 2475754826, %v1220
        %v1224 = vor.u32 %v1222, %v1223
        %v1225 = vshll.u32 2475754826, %v1219
        %v1226 = vshrl.u32 2131351028, %v1220
        %v1227 = vor.u32 %v1225, %v1226
        %v1228 = vshll.u32 2131351028, %v1219
        %v1229 = vshrl.u32 2102212464, %v1220
        %v1230 = vor.u32 %v1228, %v1229
        %v1231 = vshll.u32 2102212464, %v1219
        %v1232 = vshrl.u32 920167782, %v1220
        %v1233 = vor.u32 %v1231, %v1232
        %v1234 = vshll.u32 920167782, %v1219
        %v1235 = vshrl.u32 1326507024, %v1220
        %v1236 = vor.u32 %v1234, %v1235
        %vm1237 = vcmp.lt.s32.totalorder %v1218, 1
        %vm1238 = vcmp.lt.s32.totalorder %v1218, 2
        %vm1239 = vcmp.lt.s32.totalorder %v1218, 3
        %vm1240 = vcmp.lt.s32.totalorder %v1218, 4
        %v1241 = vsel %vm1237, %v1221, %v1224
        %v1242 = vsel %vm1240, %v1230, 2102212464
        %v1243 = vsel %vm1239, %v1227, %v1242
        %v1244 = vsel %vm1238, %v1241, %v1243
        %v1245 = vsel %vm1237, %v1224, %v1227
        %v1246 = vsel %vm1240, %v1233, 920167782
        %v1247 = vsel %vm1239, %v1230, %v1246
        %v1248 = vsel %vm1238, %v1245, %v1247
        %v1249 = vsel %vm1237, %v1227, %v1230
        %v1250 = vsel %vm1240, %v1236, 1326507024
        %v1251 = vsel %vm1239, %v1233, %v1250
        %v1252 = vsel %vm1238, %v1249, %v1251
        %v1253 = vshll.u32 %v1213, 8
        %v1254 = vmul.u32.u64.compose %v1253, %v1252
        %v1255 = vextract.low.u32 %v1254
        %v1256 = vextract.high.u32 %v1254
        %v1257 = vmul.u32.u64.compose %v1253, %v1248
        %v1258 = vextract.low.u32 %v1257
        %v1259 = vextract.high.u32 %v1257
        %v1260 = vmul.u32 %v1253, %v1244
        %v1261 = vadd.s32 %v1256, %v1258
        %vm1262 = vc.u32 %v1256, %v1258
        %v1263 = vadd.s32 %v1259, 1
        %v1264 = vsel %vm1262, %v1263, %v1259
        %v1265 = vadd.s32 %v1260, %v1264
        %v1266 = vadd.s32 %v1265, 536870912
        %v1267 = vshrl.u32 %v1266, 30
        %v1268 = vshll.u32 %v1267, 30
        %v1269 = vsub.s32 %v1265, %v1268
        %vm1270 = vcmp.lt.s32.totalorder %v1269, 0
        %v1271 = vsub.s32 0, %v1269
        %v1272 = vsel %vm1270, %v1271, %v1269
        %v1273 = vclz %v1272
        %v1274 = vsub.s32 %v1273, 2
        %vm1275 = vcmp.gt.s32.totalorder 0, %v1274
        %v1276 = vsel %vm1275, 0, %v1274
        %v1277 = vsub.s32 32, %v1276
        %v1278 = vshll.u32 %v1269, %v1276
        %v1279 = vshrl.u32 %v1261, %v1277
        %v1280 = vor.u32 %v1278, %v1279
        %v1281 = vsub.s32 4294967266, %v1276
        %v1282 = vadd.s32 %v1281, 127
        %v1283 = vshll.u32 %v1282, 23
        %v1284 = vor.u32 4788187, %v1283
        %v1285 = vand.u32 2147483647, %v1284
        %v1287 = vcvt.s32.f32 %v1280
        %v1288 = vmul.f32 %v1287, %v1285
        %v1289 = vxor.u32 %v1288, 2147483648
        %v1290 = vsel %vm1207, %v1289, %v1288
        %v1291 = vsub.s32 4, %v1267
        %v1292 = vsel %vm1207, %v1291, %v1267
        %v1293 = vsel %vm1206, %v371, %v1290
        %v1294 = vsel %vm1206, 0, %v1292
        %v1295 = vcosq.f32.pop %v1293
        %v1296 = vsinq.f32.pop %v1293
        %vm1297 = vweird.f32 %v371
        %v1298 = vadd.s32 %v1294, 3
        %v1299 = vand.u32 %v1298, 3
        %vm1300 = vcmp.lt.s32.totalorder %v1299, 2
        %vm1301 = vcmp.eq.s32.totalorder %v1299, 0
        %v1302 = vxor.u32 %v1296, 2147483648
        %v1303 = vsel %vm1301, %v1295, %v1302
        %vm1304 = vcmp.eq.s32.totalorder %v1299, 2
        %v1305 = vxor.u32 %v1295, 2147483648
        %v1306 = vsel %vm1304, %v1305, %v1296
        %v1307 = vsel %vm1300, %v1303, %v1306
        %v1308 = vsel %vm1297, nan, %v1307
        %v1309 = vand.u32 2147483647, %v372
        %vm1310 = vcmp.le.f32.partialorder %v1309, 0.7853982
        %vm1311 = vcmp.lt.s32.totalorder %v372, 0
        %v1312 = vand.u32 %v372, 2139095040
        %v1313 = vshrl.u32 %v1312, 23
        %v1314 = vsub.s32 %v1313, 127
        %v1315 = vand.u32 2147483647, %v372
        %v1316 = vand.u32 %v1315, 8388607
        %v1317 = vor.u32 %v1316, 8388608
        %v1318 = vsub.s32 0, %v1317
        %v1319 = vadd.s32 %v1314, 1
        %vm1320 = vcmp.gt.s32.totalorder %v1319, 0
        %v1321 = vsel %vm1320, %v1319, 0
        %v1322 = vshrl.u32 %v1321, 5
        %v1323 = vand.u32 %v1321, 31
        %v1324 = vsub.s32 32, %v1323
        %v1325 = vshrl.u32 683565275, %v1324
        %v1326 = vshll.u32 683565275, %v1323
        %v1327 = vshrl.u32 2475754826, %v1324
        %v1328 = vor.u32 %v1326, %v1327
        %v1329 = vshll.u32 2475754826, %v1323
        %v1330 = vshrl.u32 2131351028, %v1324
        %v1331 = vor.u32 %v1329, %v1330
        %v1332 = vshll.u32 2131351028, %v1323
        %v1333 = vshrl.u32 2102212464, %v1324
        %v1334 = vor.u32 %v1332, %v1333
        %v1335 = vshll.u32 2102212464, %v1323
        %v1336 = vshrl.u32 920167782, %v1324
        %v1337 = vor.u32 %v1335, %v1336
        %v1338 = vshll.u32 920167782, %v1323
        %v1339 = vshrl.u32 1326507024, %v1324
        %v1340 = vor.u32 %v1338, %v1339
        %vm1341 = vcmp.lt.s32.totalorder %v1322, 1
        %vm1342 = vcmp.lt.s32.totalorder %v1322, 2
        %vm1343 = vcmp.lt.s32.totalorder %v1322, 3
        %vm1344 = vcmp.lt.s32.totalorder %v1322, 4
        %v1345 = vsel %vm1341, %v1325, %v1328
        %v1346 = vsel %vm1344, %v1334, 2102212464
        %v1347 = vsel %vm1343, %v1331, %v1346
        %v1348 = vsel %vm1342, %v1345, %v1347
        %v1349 = vsel %vm1341, %v1328, %v1331
        %v1350 = vsel %vm1344, %v1337, 920167782
        %v1351 = vsel %vm1343, %v1334, %v1350
        %v1352 = vsel %vm1342, %v1349, %v1351
        %v1353 = vsel %vm1341, %v1331, %v1334
        %v1354 = vsel %vm1344, %v1340, 1326507024
        %v1355 = vsel %vm1343, %v1337, %v1354
        %v1356 = vsel %vm1342, %v1353, %v1355
        %v1357 = vshll.u32 %v1317, 8
        %v1358 = vmul.u32.u64.compose %v1357, %v1356
        %v1359 = vextract.low.u32 %v1358
        %v1360 = vextract.high.u32 %v1358
        %v1361 = vmul.u32.u64.compose %v1357, %v1352
        %v1362 = vextract.low.u32 %v1361
        %v1363 = vextract.high.u32 %v1361
        %v1364 = vmul.u32 %v1357, %v1348
        %v1365 = vadd.s32 %v1360, %v1362
        %vm1366 = vc.u32 %v1360, %v1362
        %v1367 = vadd.s32 %v1363, 1
        %v1368 = vsel %vm1366, %v1367, %v1363
        %v1369 = vadd.s32 %v1364, %v1368
        %v1370 = vadd.s32 %v1369, 536870912
        %v1371 = vshrl.u32 %v1370, 30
        %v1372 = vshll.u32 %v1371, 30
        %v1373 = vsub.s32 %v1369, %v1372
        %vm1374 = vcmp.lt.s32.totalorder %v1373, 0
        %v1375 = vsub.s32 0, %v1373
        %v1376 = vsel %vm1374, %v1375, %v1373
        %v1377 = vclz %v1376
        %v1378 = vsub.s32 %v1377, 2
        %vm1379 = vcmp.gt.s32.totalorder 0, %v1378
        %v1380 = vsel %vm1379, 0, %v1378
        %v1381 = vsub.s32 32, %v1380
        %v1382 = vshll.u32 %v1373, %v1380
        %v1383 = vshrl.u32 %v1365, %v1381
        %v1384 = vor.u32 %v1382, %v1383
        %v1385 = vsub.s32 4294967266, %v1380
        %v1386 = vadd.s32 %v1385, 127
        %v1387 = vshll.u32 %v1386, 23
        %v1388 = vor.u32 4788187, %v1387
        %v1389 = vand.u32 2147483647, %v1388
        %v1391 = vcvt.s32.f32 %v1384
        %v1392 = vmul.f32 %v1391, %v1389
        %v1393 = vxor.u32 %v1392, 2147483648
        %v1394 = vsel %vm1311, %v1393, %v1392
        %v1395 = vsub.s32 4, %v1371
        %v1396 = vsel %vm1311, %v1395, %v1371
        %v1397 = vsel %vm1310, %v372, %v1394
        %v1398 = vsel %vm1310, 0, %v1396
        %v1399 = vcosq.f32.pop %v1397
        %v1400 = vsinq.f32.pop %v1397
        %vm1401 = vweird.f32 %v372
        %v1402 = vadd.s32 %v1398, 3
        %v1403 = vand.u32 %v1402, 3
        %vm1404 = vcmp.lt.s32.totalorder %v1403, 2
        %vm1405 = vcmp.eq.s32.totalorder %v1403, 0
        %v1406 = vxor.u32 %v1400, 2147483648
        %v1407 = vsel %vm1405, %v1399, %v1406
        %vm1408 = vcmp.eq.s32.totalorder %v1403, 2
        %v1409 = vxor.u32 %v1399, 2147483648
        %v1410 = vsel %vm1408, %v1409, %v1400
        %v1411 = vsel %vm1404, %v1407, %v1410
        %v1412 = vsel %vm1401, nan, %v1411
        %1413 = vst [vmem:[%s176] sm:$0xff] %v476
        %1414 = vst [vmem:[%s176 + $0x8] sm:$0xff] %v580
        %1415 = vst [vmem:[%s176 + $0x10] sm:$0xff] %v684
        %1416 = vst [vmem:[%s176 + $0x18] sm:$0xff] %v788
        %1417 = vst [vmem:[%s176 + $0x20] sm:$0xff] %v892
        %1418 = vst [vmem:[%s176 + $0x28] sm:$0xff] %v996
        %1419 = vst [vmem:[%s176 + $0x30] sm:$0xff] %v1100
        %1420 = vst [vmem:[%s176 + $0x38] sm:$0xff] %v1204
        %1421 = vst [vmem:[%s176 + $0x40] sm:$0xff] %v1308
        %1422 = vst [vmem:[%s176 + $0x48] sm:$0xff] %v1412
        %s1423 = sand.u32 %s93, 1
        %s1424 = scalar_lea.sflag [#allocation3], %s1423
        %s1425 = sand.u32 %s93, 1
        %s1426 = smul.addr %s1425, 80
        %s1427 = scalar_lea.vmem [#allocation2], %s1426
        // Predicated region
        $region33: #{tpu_custom_call.1} parent=31 // pred_check
          %p1428 = pneg %p103
        $region34: #{tpu_custom_call.1} parent=31 // pred_check_branch
          %1430 = sbr.rel (%p1428) target = $region36
        $region35: #{tpu_custom_call.1} parent=31 // pred_region
          %s1431 = smul.u32 10, %s17
          %s1432 = ssub.s32 38, %s1431
          %p1433 = scmp.lt.s32.totalorder %s1432, 10
          %s1434 = scalar_select %p1433, %s1432, 10
          %s1435 = smul.u32 128, %s1434
          %s1437 = ssub.s32 1280, %s1435
          %1438 = vsyncadd %s1424, %s1437
          %p1439 = scmp.ne.s32.totalorder 0, %s1435
          %s1440 = smul.addr %s1431, 128
          %s1441 = scalar_lea.hbm %s3, %s1440
          %s1442 = smul.u32 8, %s1434
          %s1443 = sshll.u32 %s1427, 4
          %s1444 = int_to_ptr.vmem [resolvable:$true] %s1443
          %s1445 = sshll.u32 %s1442, 4
          %1449 = dma.vmem_to_hbm [thread:$0]  (%p1439), %s1444, %s1445, %s1441, %s1424, 128, 128, 8
        $region36: #{tpu_custom_call.1} parent=31 // pred_fallthru
          _
      $region32: #{tpu_custom_call.1} parent=5 // pred_fallthru
        _
      %p1450 = scmp.le.s32.totalorder 2, %s12
      // Predicated region
      $region37: #{tpu_custom_call.1} parent=5 // pred_check
        %p1451 = pneg %p1450
      $region38: #{tpu_custom_call.1} parent=5 // pred_check_branch
        %1453 = sbr.rel (%p1451) target = $region40
      $region39: #{tpu_custom_call.1} parent=5 // pred_region
        %s1454 = ssub.s32 %s12, 2
        // Predicated region
        $region41: #{tpu_custom_call.1} parent=39 // pred_check
          %p1455 = pneg %p109
        $region42: #{tpu_custom_call.1} parent=39 // pred_check_branch
          %1457 = sbr.rel (%p1455) target = $region44
        $region43: #{tpu_custom_call.1} parent=39 // pred_region
          %s1458 = sand.u32 %s94, 1
          %s1459 = scalar_lea.sflag [#allocation3], %s1458
          %s1460 = sand.u32 %s94, 1
          %s1461 = smul.addr %s1460, 80
          %s1462 = scalar_lea.vmem [#allocation2], %s1461
          %1463 = dma.done %s1459, 1280
        $region44: #{tpu_custom_call.1} parent=39 // pred_fallthru
          _
      $region40: #{tpu_custom_call.1} parent=5 // pred_fallthru
        _
    $region6: #{tpu_custom_call.1} parent=1 // loop_footer
      %s16 = sadd.s32 1, %s12
    $region7: #{tpu_custom_call.1} parent=1 // loop_footer_branch
      %11 = sbr.rel target = $region3
    $region8: #{tpu_custom_call.1} parent=1 // loop_exit
      _
    %1464 = vsyncpa [#allocation3], 1
    %s1465 = scalar_lea.sflag [#allocation3], 1
    %1466 = vsyncpa %s1465, 1

// kernel: tpu_custom_call.1
$region0: #{tpu_custom_call.1}
  #allocation0 [shape = 'u32[]', space=smem, size = 0x4, offset = 0x4, fixed_abs, tag = 'smem constant byte address 0x4 - core index']
  #allocation1 [shape = 'u32[144,128]{1,0:T(1,128)}', space=vmem, size = 0x12000, scoped, tag = 'internal scratch']
  %s0 = inlined_call_operand.vmem [shape: f32[300,32], index: 0, kind: input, shape index: {}]
  %s1 = inlined_call_operand.vmem [shape: f32[32,128], index: 1, kind: input, shape index: {}]
  %s2 = inlined_call_operand.vmem [shape: f32[1,128], index: 2, kind: input, shape index: {}]
  %s3 = inlined_call_operand.hbm [shape: f32[300,128], index: 3, kind: output, shape index: {}]
  %s4 = sld [smem:[#allocation0]]
  $region45: #{tpu_custom_call.1} parent=0
    _
  %s6 = ssub.s32 1, %s4
  %s7 = scalar_select 0, %s6, %s4
  $region1: #{tpu_custom_call.1} parent=0
    #allocation2 [shape = 'u8[81920]{0}', space=vmem, size = 0x14000, scoped, tag = 'output window, operand 0']
    #allocation3 [shape = 's32[2]{0}', space=sflag, size = 0x8, scoped, tag = 'scoped memory for tpu_custom_call.1']
    %8 = vsyncpa [#allocation3], 0
    %s9 = scalar_lea.sflag [#allocation3], 1
    %10 = vsyncpa %s9, 0
    loop: start=0, step=1, limit=6
    $region2: #{tpu_custom_call.1} parent=1 // loop_pre_header
      _
    $region3: #{tpu_custom_call.1} parent=1 // loop_header
      %s12 = sphi 0, %s16
      %p13 = scmp.ge.s32.totalorder %s12, 6
      %s22 = sphi 0, %s24
      %s25 = sphi 0, %s22
      %s26 = sphi 0, %s25
      %s42 = sphi 0, %s26
      %s46 = sphi 0, %s46
      %s48 = sphi 0, %s46
      %s49 = sphi 0, %s48
      %s63 = sphi 0, %s49
      %s67 = sphi 0, %s67
      %s69 = sphi 0, %s67
      %s70 = sphi 0, %s69
      %s84 = sphi 0, %s70
      %s90 = sphi 0, %s92
      %s93 = sphi 0, %s90
      %s94 = sphi 0, %s93
      %s110 = sphi 0, %s94
    $region4: #{tpu_custom_call.1} parent=1 // loop_header_branch
      %15 = sbr.rel (%p13) target = $region8
    $region5: #{tpu_custom_call.1} parent=1 // loop_body
      %s17 = ssub.s32 %s12, 1
      %s18 = ssub.s32 %s12, 2
      %s19 = sadd.s32 %s12, 1
      %s20 = ssub.s32 %s12, %s19
      %p21 = scmp.eq.s32.totalorder %s20, 0
      %s23 = sadd.s32 %s22, 1
      %s24 = scalar_select %p21, %s22, %s23
      %p27 = pneg %p21
      %p28 = scmp.eq.s32.totalorder %s12, 3
      %p29 = por %p27, %p28
      %p30 = scmp.ne.s32.totalorder %s22, %s25
      %p31 = scmp.eq.s32.totalorder %s12, 0
      %p32 = por %p30, %p31
      %p33 = scmp.ne.s32.totalorder %s22, %s25
      %p34 = scmp.eq.s32.totalorder %s17, 3
      %p35 = por %p33, %p34
      %p36 = scmp.ne.s32.totalorder %s25, %s26
      %p37 = scmp.eq.s32.totalorder %s17, 0
      %p38 = por %p36, %p37
      %p39 = scmp.ne.s32.totalorder %s25, %s26
      %p40 = scmp.eq.s32.totalorder %s18, 3
      %p41 = por %p39, %p40
      %p43 = scmp.ne.s32.totalorder %s26, %s42
      %p44 = scmp.eq.s32.totalorder %s18, 0
      %p45 = por %p43, %p44
      %s47 = sadd.s32 %s46, 1
      %p50 = scmp.eq.s32.totalorder %s12, 3
      %p51 = scmp.ne.s32.totalorder %s46, %s48
      %p52 = scmp.eq.s32.totalorder %s12, 0
      %p53 = por %p51, %p52
      %p54 = scmp.ne.s32.totalorder %s46, %s48
      %p55 = scmp.eq.s32.totalorder %s17, 3
      %p56 = por %p54, %p55
      %p57 = scmp.ne.s32.totalorder %s48, %s49
      %p58 = scmp.eq.s32.totalorder %s17, 0
      %p59 = por %p57, %p58
      %p60 = scmp.ne.s32.totalorder %s48, %s49
      %p61 = scmp.eq.s32.totalorder %s18, 3
      %p62 = por %p60, %p61
      %p64 = scmp.ne.s32.totalorder %s49, %s63
      %p65 = scmp.eq.s32.totalorder %s18, 0
      %p66 = por %p64, %p65
      %s68 = sadd.s32 %s67, 1
      %p71 = scmp.eq.s32.totalorder %s12, 3
      %p72 = scmp.ne.s32.totalorder %s67, %s69
      %p73 = scmp.eq.s32.totalorder %s12, 0
      %p74 = por %p72, %p73
      %p75 = scmp.ne.s32.totalorder %s67, %s69
      %p76 = scmp.eq.s32.totalorder %s17, 3
      %p77 = por %p75, %p76
      %p78 = scmp.ne.s32.totalorder %s69, %s70
      %p79 = scmp.eq.s32.totalorder %s17, 0
      %p80 = por %p78, %p79
      %p81 = scmp.ne.s32.totalorder %s69, %s70
      %p82 = scmp.eq.s32.totalorder %s18, 3
      %p83 = por %p81, %p82
      %p85 = scmp.ne.s32.totalorder %s70, %s84
      %p86 = scmp.eq.s32.totalorder %s18, 0
      %p87 = por %p85, %p86
      %s88 = ssub.s32 %s12, %s19
      %p89 = scmp.eq.s32.totalorder %s88, 0
      %s91 = sadd.s32 %s90, 1
      %s92 = scalar_select %p89, %s90, %s91
      %p95 = pneg %p89
      %p96 = scmp.eq.s32.totalorder %s12, 3
      %p97 = por %p95, %p96
      %p98 = scmp.ne.s32.totalorder %s90, %s93
      %p99 = scmp.eq.s32.totalorder %s12, 0
      %p100 = por %p98, %p99
      %p101 = scmp.ne.s32.totalorder %s90, %s93
      %p102 = scmp.eq.s32.totalorder %s17, 3
      %p103 = por %p101, %p102
      %p104 = scmp.ne.s32.totalorder %s93, %s94
      %p105 = scmp.eq.s32.totalorder %s17, 0
      %p106 = por %p104, %p105
      %p107 = scmp.ne.s32.totalorder %s93, %s94
      %p108 = scmp.eq.s32.totalorder %s18, 3
      %p109 = por %p107, %p108
      %p111 = scmp.ne.s32.totalorder %s94, %s110
      %p112 = scmp.eq.s32.totalorder %s18, 0
      %p113 = por %p111, %p112
      %p114 = scmp.le.s32.totalorder 1, %s12
      %p115 = scmp.lt.s32.totalorder %s12, 5
      %p116 = pnand %p114, %p115
      %p117 = pneg %p116
      // Predicated region
      $region9: #{tpu_custom_call.1} parent=5 // pred_check
        _
      $region10: #{tpu_custom_call.1} parent=5 // pred_check_branch
        %119 = sbr.rel (%p116) target = $region12
      $region11: #{tpu_custom_call.1} parent=5 // pred_region
        %s120 = ssub.s32 %s12, 1
        // Predicated region
        $region13: #{tpu_custom_call.1} parent=11 // pred_check
          %p121 = pneg %p59
        $region14: #{tpu_custom_call.1} parent=11 // pred_check_branch
          %123 = sbr.rel (%p121) target = $region16
        $region15: #{tpu_custom_call.1} parent=11 // pred_region
          _
        $region16: #{tpu_custom_call.1} parent=11 // pred_fallthru
          _
        // Predicated region
        $region17: #{tpu_custom_call.1} parent=11 // pred_check
          %p124 = pneg %p80
        $region18: #{tpu_custom_call.1} parent=11 // pred_check_branch
          %126 = sbr.rel (%p124) target = $region20
        $region19: #{tpu_custom_call.1} parent=11 // pred_region
          _
        $region20: #{tpu_custom_call.1} parent=11 // pred_fallthru
          _
      $region12: #{tpu_custom_call.1} parent=5 // pred_fallthru
        _
      %p127 = scmp.lt.s32.totalorder %s12, 4
      // Predicated region
      $region21: #{tpu_custom_call.1} parent=5 // pred_check
        %p128 = pneg %p127
      $region22: #{tpu_custom_call.1} parent=5 // pred_check_branch
        %130 = sbr.rel (%p128) target = $region24
      $region23: #{tpu_custom_call.1} parent=5 // pred_region
        // Predicated region
        $region25: #{tpu_custom_call.1} parent=23 // pred_check
          %p131 = pneg %p32
        $region26: #{tpu_custom_call.1} parent=23 // pred_check_branch
          %133 = sbr.rel (%p131) target = $region28
        $region27: #{tpu_custom_call.1} parent=23 // pred_region
          %s134 = smul.u32 10, %s12
          %s135 = ssub.s32 38, %s134
          %p136 = scmp.lt.s32.totalorder %s135, 10
          %s137 = scalar_select %p136, %s135, 10
          %s138 = smul.u32 128, %s137
          %p139 = scmp.lt.s32.totalorder %s134, 37
          %s140 = scalar_select %p139, %s134, 37
          %s141 = smul.addr %s140, 8
          %s142 = scalar_lea.vmem %s0, %s141
          %s143 = smul.u32 10, %s12
          %s144 = ssub.s32 38, %s143
          %p145 = scmp.lt.s32.totalorder %s144, 10
          %s146 = scalar_select %p145, %s144, 10
          %s147 = smul.u32 128, %s146
        $region28: #{tpu_custom_call.1} parent=23 // pred_fallthru
          _
      $region24: #{tpu_custom_call.1} parent=5 // pred_fallthru
        _
      %p148 = scmp.le.s32.totalorder 1, %s12
      %p149 = scmp.lt.s32.totalorder %s12, 5
      %p150 = pnand %p148, %p149
      %p151 = pneg %p150
      // Predicated region
      $region29: #{tpu_custom_call.1} parent=5 // pred_check
        _
      $region30: #{tpu_custom_call.1} parent=5 // pred_check_branch
        %153 = sbr.rel (%p150) target = $region32
      $region31: #{tpu_custom_call.1} parent=5 // pred_region
        %s154 = ssub.s32 %s12, 1
        %s155 = smul.u32 10, %s17
        %s156 = ssub.s32 38, %s155
        %p157 = scmp.lt.s32.totalorder %s156, 10
        %s158 = scalar_select %p157, %s156, 10
        %s159 = smul.u32 128, %s158
        %p160 = scmp.lt.s32.totalorder %s155, 37
        %s161 = scalar_select %p160, %s155, 37
        %s162 = smul.addr %s161, 8
        %s163 = scalar_lea.vmem %s0, %s162
        %p164 = pneg %p38
        %p165 = pneg %p35
        %p166 = pneg %p59
        %p167 = pneg %p56
        %p168 = pneg %p80
        %p169 = pneg %p77
        %p170 = pneg %p106
        %p171 = pneg %p103
        %s172 = sand.u32 %s93, 1
        %s173 = scalar_lea.sflag [#allocation3], %s172
        %s174 = sand.u32 %s93, 1
        %s175 = smul.addr %s174, 80
        %s176 = scalar_lea.vmem [#allocation2], %s175
        %s177 = smul.u32 10, %s17
        %s178 = ssub.s32 38, %s177
        %p179 = scmp.lt.s32.totalorder %s178, 10
        %s180 = scalar_select %p179, %s178, 10
        %s181 = smul.u32 128, %s180
        %p182 = scmp.lt.s32.totalorder %s177, 37
        %s183 = scalar_select %p182, %s177, 37
        %s184 = smul.addr %s183, 8
        %s185 = scalar_lea.vmem %s0, %s184
        %s186 = smul.u32 10, %s17
        %s187 = ssub.s32 38, %s186
        %p188 = scmp.lt.s32.totalorder %s187, 10
        %s189 = scalar_select %p188, %s187, 10
        %s190 = smul.u32 128, %s189
        %s191 = smul.u32 10, %s17
        %s192 = ssub.s32 38, %s191
        %p193 = scmp.lt.s32.totalorder %s192, 10
        %s194 = scalar_select %p193, %s192, 10
        %s195 = smul.u32 128, %s194
        %v196 = vld [vmem:[%s185] sm:$0xff]
        %v197 = vld [vmem:[%s185 + $0x8] sm:$0xff]
        %v198 = vld [vmem:[%s185 + $0x10] sm:$0xff]
        %v199 = vld [vmem:[%s185 + $0x18] sm:$0xff]
        %v200 = vld [vmem:[%s185 + $0x20] sm:$0xff]
        %v201 = vld [vmem:[%s185 + $0x28] sm:$0xff]
        %v202 = vld [vmem:[%s185 + $0x30] sm:$0xff]
        %v203 = vld [vmem:[%s185 + $0x38] sm:$0xff]
        %v204 = vld [vmem:[%s185 + $0x40] sm:$0xff]
        %v205 = vld [vmem:[%s185 + $0x48] sm:$0xff]
        %v206 = vld [vmem:[%s1] sm:$0xff]
        %v207 = vld [vmem:[%s1 + $0x8] sm:$0xff]
        %v208 = vld [vmem:[%s1 + $0x10] sm:$0xff]
        %v209 = vld [vmem:[%s1 + $0x18] sm:$0xff]
        %v210 = vld [vmem:[%s2] sm:$0x1]
        %v212 = vlaneseq
        %v213 = vshrl.u32 %v212, 7
        %v214 = vsub.s32 0, %v213
        %v215 = vrot.slane %v210, %v214
        %vm217 = vcmask 261120
        %v219 = vsel %vm217, %v196, 0
        %v222 = vsel %vm217, %v197, 0
        %v225 = vsel %vm217, %v198, 0
        %v228 = vsel %vm217, %v199, 0
        %v231 = vsel %vm217, %v200, 0
        %v234 = vsel %vm217, %v201, 0
        %v237 = vsel %vm217, %v202, 0
        %v240 = vsel %vm217, %v203, 0
        %v243 = vsel %vm217, %v204, 0
        %v246 = vsel %vm217, %v205, 0
        %248 = vmatprep.subr.mxu0 0.0
        %249 = vmatpush1.msra.mxu0 %v206
        %250 = vmatprep.subr.mxu0 0.0
        %251 = vmatpush1.msra.mxu0 %v207
        %252 = vmatprep.subr.mxu0 0.0
        %253 = vmatpush1.msra.mxu0 %v208
        %254 = vmatprep.subr.mxu0 0.0
        %255 = vmatpush1.msra.mxu0 %v209
        %256 = vmatprep.subr.mxu0 0.0
        %257 = vmatpush1.msra.mxu0 0.0
        %258 = vmatprep.subr.mxu0 0.0
        %259 = vmatpush1.msra.mxu0 0.0
        %260 = vmatprep.subr.mxu0 0.0
        %261 = vmatpush1.msra.mxu0 0.0
        %262 = vmatprep.subr.mxu0 0.0
        %263 = vmatpush1.msra.mxu0 0.0
        %264 = vmatprep.subr.mxu0 0.0
        %265 = vmatpush1.msra.mxu0 0.0
        %266 = vmatprep.subr.mxu0 0.0
        %267 = vmatpush1.msra.mxu0 0.0
        %268 = vmatprep.subr.mxu0 0.0
        %269 = vmatpush1.msra.mxu0 0.0
        %270 = vmatprep.subr.mxu0 0.0
        %271 = vmatpush1.msra.mxu0 0.0
        %272 = vmatprep.subr.mxu0 0.0
        %273 = vmatpush1.msra.mxu0 0.0
        %274 = vmatprep.subr.mxu0 0.0
        %275 = vmatpush1.msra.mxu0 0.0
        %276 = vmatprep.subr.mxu0 0.0
        %277 = vmatpush1.msra.mxu0 0.0
        %278 = vmatprep.subr.mxu0 0.0
        %279 = vmatpush1.msra.mxu0 0.0
        %280 = vmatprep.subr.mxu0 0.0
        %281 = vmatpush1.msra.mxu0 0.0
        %282 = vmatprep.subr.mxu0 0.0
        %283 = vmatpush1.msra.mxu0 0.0
        %284 = vmatprep.subr.mxu0 0.0
        %285 = vmatpush1.msra.mxu0 0.0
        %286 = vmatprep.subr.mxu0 0.0
        %287 = vmatpush1.msra.mxu0 0.0
        %288 = vmatprep.subr.mxu0 0.0
        %289 = vmatpush1.msra.mxu0 0.0
        %290 = vmatprep.subr.mxu0 0.0
        %291 = vmatpush1.msra.mxu0 0.0
        %292 = vmatprep.subr.mxu0 0.0
        %293 = vmatpush1.msra.mxu0 0.0
        %294 = vmatprep.subr.mxu0 0.0
        %295 = vmatpush1.msra.mxu0 0.0
        %296 = vmatprep.subr.mxu0 0.0
        %297 = vmatpush1.msra.mxu0 0.0
        %298 = vmatprep.subr.mxu0 0.0
        %299 = vmatpush1.msra.mxu0 0.0
        %300 = vmatprep.subr.mxu0 0.0
        %301 = vmatpush1.msra.mxu0 0.0
        %302 = vmatprep.subr.mxu0 0.0
        %303 = vmatpush1.msra.mxu0 0.0
        %304 = vmatprep.subr.mxu0 0.0
        %305 = vmatpush1.msra.mxu0 0.0
        %306 = vmatprep.subr.mxu0 0.0
        %307 = vmatpush1.msra.mxu0 0.0
        %308 = vmatprep.subr.mxu0 0.0
        %309 = vmatpush1.msra.mxu0 0.0
        %310 = vmatprep.subr.mxu0 0.0
        %311 = vmatpush1.msra.mxu0 0.0
        %312 = vmatprep.mubr.f32.mxu0 0.0
        %313 = vmatmul.mubr.f32.gmra.mrb[0].mxu0 %v219
        %v314 = vpop.f32.mrb[0].mxu0
        %v315 = vadd.f32 %v215, %v314
        %v316 = vpop.f32.mrb[0].mxu0
        %317 = vmatprep.mubr.f32.mxu0 0.0
        %318 = vmatmul.mubr.f32.gmra.mrb[0].mxu0 %v222
        %v319 = vpop.f32.mrb[0].mxu0
        %v320 = vadd.f32 %v215, %v319
        %v321 = vpop.f32.mrb[0].mxu0
        %322 = vmatprep.mubr.f32.mxu0 0.0
        %323 = vmatmul.mubr.f32.gmra.mrb[0].mxu0 %v225
        %v324 = vpop.f32.mrb[0].mxu0
        %v325 = vadd.f32 %v215, %v324
        %v326 = vpop.f32.mrb[0].mxu0
        %327 = vmatprep.mubr.f32.mxu0 0.0
        %328 = vmatmul.mubr.f32.gmra.mrb[0].mxu0 %v228
        %v329 = vpop.f32.mrb[0].mxu0
        %v330 = vadd.f32 %v215, %v329
        %v331 = vpop.f32.mrb[0].mxu0
        %332 = vmatprep.mubr.f32.mxu0 0.0
        %333 = vmatmul.mubr.f32.gmra.mrb[0].mxu0 %v231
        %v334 = vpop.f32.mrb[0].mxu0
        %v335 = vadd.f32 %v215, %v334
        %v336 = vpop.f32.mrb[0].mxu0
        %337 = vmatprep.mubr.f32.mxu0 0.0
        %338 = vmatmul.mubr.f32.gmra.mrb[0].mxu0 %v234
        %v339 = vpop.f32.mrb[0].mxu0
        %v340 = vadd.f32 %v215, %v339
        %v341 = vpop.f32.mrb[0].mxu0
        %342 = vmatprep.mubr.f32.mxu0 0.0
        %343 = vmatmul.mubr.f32.gmra.mrb[0].mxu0 %v237
        %v344 = vpop.f32.mrb[0].mxu0
        %v345 = vadd.f32 %v215, %v344
        %v346 = vpop.f32.mrb[0].mxu0
        %347 = vmatprep.mubr.f32.mxu0 0.0
        %348 = vmatmul.mubr.f32.gmra.mrb[0].mxu0 %v240
        %v349 = vpop.f32.mrb[0].mxu0
        %v350 = vadd.f32 %v215, %v349
        %v351 = vpop.f32.mrb[0].mxu0
        %352 = vmatprep.mubr.f32.mxu0 0.0
        %353 = vmatmul.mubr.f32.gmra.mrb[0].mxu0 %v243
        %v354 = vpop.f32.mrb[0].mxu0
        %v355 = vadd.f32 %v215, %v354
        %v356 = vpop.f32.mrb[0].mxu0
        %357 = vmatprep.mubr.f32.mxu0 0.0
        %358 = vmatmul.mubr.f32.gmra.mrb[0].mxu0 %v246
        %v359 = vpop.f32.mrb[0].mxu0
        %v360 = vadd.f32 %v215, %v359
        %v361 = vpop.f32.mrb[0].mxu0
        %362 = vdwg.mxu0
        %v363 = vmul.f32 %v315, 30.0
        %v364 = vmul.f32 %v320, 30.0
        %v365 = vmul.f32 %v325, 30.0
        %v366 = vmul.f32 %v330, 30.0
        %v367 = vmul.f32 %v335, 30.0
        %v368 = vmul.f32 %v340, 30.0
        %v369 = vmul.f32 %v345, 30.0
        %v370 = vmul.f32 %v350, 30.0
        %v371 = vmul.f32 %v355, 30.0
        %v372 = vmul.f32 %v360, 30.0
        %v373 = vand.u32 2147483647, %v363
        %vm374 = vcmp.le.f32.partialorder %v373, 0.7853982
        %vm375 = vcmp.lt.s32.totalorder %v363, 0
        %v376 = vand.u32 %v363, 2139095040
        %v377 = vshrl.u32 %v376, 23
        %v378 = vsub.s32 %v377, 127
        %v379 = vand.u32 2147483647, %v363
        %v380 = vand.u32 %v379, 8388607
        %v381 = vor.u32 %v380, 8388608
        %v382 = vsub.s32 0, %v381
        %v383 = vadd.s32 %v378, 1
        %vm384 = vcmp.gt.s32.totalorder %v383, 0
        %v385 = vsel %vm384, %v383, 0
        %v386 = vshrl.u32 %v385, 5
        %v387 = vand.u32 %v385, 31
        %v388 = vsub.s32 32, %v387
        %v389 = vshrl.u32 683565275, %v388
        %v390 = vshll.u32 683565275, %v387
        %v391 = vshrl.u32 2475754826, %v388
        %v392 = vor.u32 %v390, %v391
        %v393 = vshll.u32 2475754826, %v387
        %v394 = vshrl.u32 2131351028, %v388
        %v395 = vor.u32 %v393, %v394
        %v396 = vshll.u32 2131351028, %v387
        %v397 = vshrl.u32 2102212464, %v388
        %v398 = vor.u32 %v396, %v397
        %v399 = vshll.u32 2102212464, %v387
        %v400 = vshrl.u32 920167782, %v388
        %v401 = vor.u32 %v399, %v400
        %v402 = vshll.u32 920167782, %v387
        %v403 = vshrl.u32 1326507024, %v388
        %v404 = vor.u32 %v402, %v403
        %vm405 = vcmp.lt.s32.totalorder %v386, 1
        %vm406 = vcmp.lt.s32.totalorder %v386, 2
        %vm407 = vcmp.lt.s32.totalorder %v386, 3
        %vm408 = vcmp.lt.s32.totalorder %v386, 4
        %v409 = vsel %vm405, %v389, %v392
        %v410 = vsel %vm408, %v398, 2102212464
        %v411 = vsel %vm407, %v395, %v410
        %v412 = vsel %vm406, %v409, %v411
        %v413 = vsel %vm405, %v392, %v395
        %v414 = vsel %vm408, %v401, 920167782
        %v415 = vsel %vm407, %v398, %v414
        %v416 = vsel %vm406, %v413, %v415
        %v417 = vsel %vm405, %v395, %v398
        %v418 = vsel %vm408, %v404, 1326507024
        %v419 = vsel %vm407, %v401, %v418
        %v420 = vsel %vm406, %v417, %v419
        %v421 = vshll.u32 %v381, 8
        %v422 = vmul.u32.u64.compose %v421, %v420
        %v423 = vextract.low.u32 %v422
        %v424 = vextract.high.u32 %v422
        %v425 = vmul.u32.u64.compose %v421, %v416
        %v426 = vextract.low.u32 %v425
        %v427 = vextract.high.u32 %v425
        %v428 = vmul.u32 %v421, %v412
        %v429 = vadd.s32 %v424, %v426
        %vm430 = vc.u32 %v424, %v426
        %v431 = vadd.s32 %v427, 1
        %v432 = vsel %vm430, %v431, %v427
        %v433 = vadd.s32 %v428, %v432
        %v434 = vadd.s32 %v433, 536870912
        %v435 = vshrl.u32 %v434, 30
        %v436 = vshll.u32 %v435, 30
        %v437 = vsub.s32 %v433, %v436
        %vm438 = vcmp.lt.s32.totalorder %v437, 0
        %v439 = vsub.s32 0, %v437
        %v440 = vsel %vm438, %v439, %v437
        %v441 = vclz %v440
        %v442 = vsub.s32 %v441, 2
        %vm443 = vcmp.gt.s32.totalorder 0, %v442
        %v444 = vsel %vm443, 0, %v442
        %v445 = vsub.s32 32, %v444
        %v446 = vshll.u32 %v437, %v444
        %v447 = vshrl.u32 %v429, %v445
        %v448 = vor.u32 %v446, %v447
        %v449 = vsub.s32 4294967266, %v444
        %v450 = vadd.s32 %v449, 127
        %v451 = vshll.u32 %v450, 23
        %v452 = vor.u32 4788187, %v451
        %v453 = vand.u32 2147483647, %v452
        %v455 = vcvt.s32.f32 %v448
        %v456 = vmul.f32 %v455, %v453
        %v457 = vxor.u32 %v456, 2147483648
        %v458 = vsel %vm375, %v457, %v456
        %v459 = vsub.s32 4, %v435
        %v460 = vsel %vm375, %v459, %v435
        %v461 = vsel %vm374, %v363, %v458
        %v462 = vsel %vm374, 0, %v460
        %v463 = vcosq.f32.pop %v461
        %v464 = vsinq.f32.pop %v461
        %vm465 = vweird.f32 %v363
        %v466 = vadd.s32 %v462, 3
        %v467 = vand.u32 %v466, 3
        %vm468 = vcmp.lt.s32.totalorder %v467, 2
        %vm469 = vcmp.eq.s32.totalorder %v467, 0
        %v470 = vxor.u32 %v464, 2147483648
        %v471 = vsel %vm469, %v463, %v470
        %vm472 = vcmp.eq.s32.totalorder %v467, 2
        %v473 = vxor.u32 %v463, 2147483648
        %v474 = vsel %vm472, %v473, %v464
        %v475 = vsel %vm468, %v471, %v474
        %v476 = vsel %vm465, nan, %v475
        %v477 = vand.u32 2147483647, %v364
        %vm478 = vcmp.le.f32.partialorder %v477, 0.7853982
        %vm479 = vcmp.lt.s32.totalorder %v364, 0
        %v480 = vand.u32 %v364, 2139095040
        %v481 = vshrl.u32 %v480, 23
        %v482 = vsub.s32 %v481, 127
        %v483 = vand.u32 2147483647, %v364
        %v484 = vand.u32 %v483, 8388607
        %v485 = vor.u32 %v484, 8388608
        %v486 = vsub.s32 0, %v485
        %v487 = vadd.s32 %v482, 1
        %vm488 = vcmp.gt.s32.totalorder %v487, 0
        %v489 = vsel %vm488, %v487, 0
        %v490 = vshrl.u32 %v489, 5
        %v491 = vand.u32 %v489, 31
        %v492 = vsub.s32 32, %v491
        %v493 = vshrl.u32 683565275, %v492
        %v494 = vshll.u32 683565275, %v491
        %v495 = vshrl.u32 2475754826, %v492
        %v496 = vor.u32 %v494, %v495
        %v497 = vshll.u32 2475754826, %v491
        %v498 = vshrl.u32 2131351028, %v492
        %v499 = vor.u32 %v497, %v498
        %v500 = vshll.u32 2131351028, %v491
        %v501 = vshrl.u32 2102212464, %v492
        %v502 = vor.u32 %v500, %v501
        %v503 = vshll.u32 2102212464, %v491
        %v504 = vshrl.u32 920167782, %v492
        %v505 = vor.u32 %v503, %v504
        %v506 = vshll.u32 920167782, %v491
        %v507 = vshrl.u32 1326507024, %v492
        %v508 = vor.u32 %v506, %v507
        %vm509 = vcmp.lt.s32.totalorder %v490, 1
        %vm510 = vcmp.lt.s32.totalorder %v490, 2
        %vm511 = vcmp.lt.s32.totalorder %v490, 3
        %vm512 = vcmp.lt.s32.totalorder %v490, 4
        %v513 = vsel %vm509, %v493, %v496
        %v514 = vsel %vm512, %v502, 2102212464
        %v515 = vsel %vm511, %v499, %v514
        %v516 = vsel %vm510, %v513, %v515
        %v517 = vsel %vm509, %v496, %v499
        %v518 = vsel %vm512, %v505, 920167782
        %v519 = vsel %vm511, %v502, %v518
        %v520 = vsel %vm510, %v517, %v519
        %v521 = vsel %vm509, %v499, %v502
        %v522 = vsel %vm512, %v508, 1326507024
        %v523 = vsel %vm511, %v505, %v522
        %v524 = vsel %vm510, %v521, %v523
        %v525 = vshll.u32 %v485, 8
        %v526 = vmul.u32.u64.compose %v525, %v524
        %v527 = vextract.low.u32 %v526
        %v528 = vextract.high.u32 %v526
        %v529 = vmul.u32.u64.compose %v525, %v520
        %v530 = vextract.low.u32 %v529
        %v531 = vextract.high.u32 %v529
        %v532 = vmul.u32 %v525, %v516
        %v533 = vadd.s32 %v528, %v530
        %vm534 = vc.u32 %v528, %v530
        %v535 = vadd.s32 %v531, 1
        %v536 = vsel %vm534, %v535, %v531
        %v537 = vadd.s32 %v532, %v536
        %v538 = vadd.s32 %v537, 536870912
        %v539 = vshrl.u32 %v538, 30
        %v540 = vshll.u32 %v539, 30
        %v541 = vsub.s32 %v537, %v540
        %vm542 = vcmp.lt.s32.totalorder %v541, 0
        %v543 = vsub.s32 0, %v541
        %v544 = vsel %vm542, %v543, %v541
        %v545 = vclz %v544
        %v546 = vsub.s32 %v545, 2
        %vm547 = vcmp.gt.s32.totalorder 0, %v546
        %v548 = vsel %vm547, 0, %v546
        %v549 = vsub.s32 32, %v548
        %v550 = vshll.u32 %v541, %v548
        %v551 = vshrl.u32 %v533, %v549
        %v552 = vor.u32 %v550, %v551
        %v553 = vsub.s32 4294967266, %v548
        %v554 = vadd.s32 %v553, 127
        %v555 = vshll.u32 %v554, 23
        %v556 = vor.u32 4788187, %v555
        %v557 = vand.u32 2147483647, %v556
        %v559 = vcvt.s32.f32 %v552
        %v560 = vmul.f32 %v559, %v557
        %v561 = vxor.u32 %v560, 2147483648
        %v562 = vsel %vm479, %v561, %v560
        %v563 = vsub.s32 4, %v539
        %v564 = vsel %vm479, %v563, %v539
        %v565 = vsel %vm478, %v364, %v562
        %v566 = vsel %vm478, 0, %v564
        %v567 = vcosq.f32.pop %v565
        %v568 = vsinq.f32.pop %v565
        %vm569 = vweird.f32 %v364
        %v570 = vadd.s32 %v566, 3
        %v571 = vand.u32 %v570, 3
        %vm572 = vcmp.lt.s32.totalorder %v571, 2
        %vm573 = vcmp.eq.s32.totalorder %v571, 0
        %v574 = vxor.u32 %v568, 2147483648
        %v575 = vsel %vm573, %v567, %v574
        %vm576 = vcmp.eq.s32.totalorder %v571, 2
        %v577 = vxor.u32 %v567, 2147483648
        %v578 = vsel %vm576, %v577, %v568
        %v579 = vsel %vm572, %v575, %v578
        %v580 = vsel %vm569, nan, %v579
        %v581 = vand.u32 2147483647, %v365
        %vm582 = vcmp.le.f32.partialorder %v581, 0.7853982
        %vm583 = vcmp.lt.s32.totalorder %v365, 0
        %v584 = vand.u32 %v365, 2139095040
        %v585 = vshrl.u32 %v584, 23
        %v586 = vsub.s32 %v585, 127
        %v587 = vand.u32 2147483647, %v365
        %v588 = vand.u32 %v587, 8388607
        %v589 = vor.u32 %v588, 8388608
        %v590 = vsub.s32 0, %v589
        %v591 = vadd.s32 %v586, 1
        %vm592 = vcmp.gt.s32.totalorder %v591, 0
        %v593 = vsel %vm592, %v591, 0
        %v594 = vshrl.u32 %v593, 5
        %v595 = vand.u32 %v593, 31
        %v596 = vsub.s32 32, %v595
        %v597 = vshrl.u32 683565275, %v596
        %v598 = vshll.u32 683565275, %v595
        %v599 = vshrl.u32 2475754826, %v596
        %v600 = vor.u32 %v598, %v599
        %v601 = vshll.u32 2475754826, %v595
        %v602 = vshrl.u32 2131351028, %v596
        %v603 = vor.u32 %v601, %v602
        %v604 = vshll.u32 2131351028, %v595
        %v605 = vshrl.u32 2102212464, %v596
        %v606 = vor.u32 %v604, %v605
        %v607 = vshll.u32 2102212464, %v595
        %v608 = vshrl.u32 920167782, %v596
        %v609 = vor.u32 %v607, %v608
        %v610 = vshll.u32 920167782, %v595
        %v611 = vshrl.u32 1326507024, %v596
        %v612 = vor.u32 %v610, %v611
        %vm613 = vcmp.lt.s32.totalorder %v594, 1
        %vm614 = vcmp.lt.s32.totalorder %v594, 2
        %vm615 = vcmp.lt.s32.totalorder %v594, 3
        %vm616 = vcmp.lt.s32.totalorder %v594, 4
        %v617 = vsel %vm613, %v597, %v600
        %v618 = vsel %vm616, %v606, 2102212464
        %v619 = vsel %vm615, %v603, %v618
        %v620 = vsel %vm614, %v617, %v619
        %v621 = vsel %vm613, %v600, %v603
        %v622 = vsel %vm616, %v609, 920167782
        %v623 = vsel %vm615, %v606, %v622
        %v624 = vsel %vm614, %v621, %v623
        %v625 = vsel %vm613, %v603, %v606
        %v626 = vsel %vm616, %v612, 1326507024
        %v627 = vsel %vm615, %v609, %v626
        %v628 = vsel %vm614, %v625, %v627
        %v629 = vshll.u32 %v589, 8
        %v630 = vmul.u32.u64.compose %v629, %v628
        %v631 = vextract.low.u32 %v630
        %v632 = vextract.high.u32 %v630
        %v633 = vmul.u32.u64.compose %v629, %v624
        %v634 = vextract.low.u32 %v633
        %v635 = vextract.high.u32 %v633
        %v636 = vmul.u32 %v629, %v620
        %v637 = vadd.s32 %v632, %v634
        %vm638 = vc.u32 %v632, %v634
        %v639 = vadd.s32 %v635, 1
        %v640 = vsel %vm638, %v639, %v635
        %v641 = vadd.s32 %v636, %v640
        %v642 = vadd.s32 %v641, 536870912
        %v643 = vshrl.u32 %v642, 30
        %v644 = vshll.u32 %v643, 30
        %v645 = vsub.s32 %v641, %v644
        %vm646 = vcmp.lt.s32.totalorder %v645, 0
        %v647 = vsub.s32 0, %v645
        %v648 = vsel %vm646, %v647, %v645
        %v649 = vclz %v648
        %v650 = vsub.s32 %v649, 2
        %vm651 = vcmp.gt.s32.totalorder 0, %v650
        %v652 = vsel %vm651, 0, %v650
        %v653 = vsub.s32 32, %v652
        %v654 = vshll.u32 %v645, %v652
        %v655 = vshrl.u32 %v637, %v653
        %v656 = vor.u32 %v654, %v655
        %v657 = vsub.s32 4294967266, %v652
        %v658 = vadd.s32 %v657, 127
        %v659 = vshll.u32 %v658, 23
        %v660 = vor.u32 4788187, %v659
        %v661 = vand.u32 2147483647, %v660
        %v663 = vcvt.s32.f32 %v656
        %v664 = vmul.f32 %v663, %v661
        %v665 = vxor.u32 %v664, 2147483648
        %v666 = vsel %vm583, %v665, %v664
        %v667 = vsub.s32 4, %v643
        %v668 = vsel %vm583, %v667, %v643
        %v669 = vsel %vm582, %v365, %v666
        %v670 = vsel %vm582, 0, %v668
        %v671 = vcosq.f32.pop %v669
        %v672 = vsinq.f32.pop %v669
        %vm673 = vweird.f32 %v365
        %v674 = vadd.s32 %v670, 3
        %v675 = vand.u32 %v674, 3
        %vm676 = vcmp.lt.s32.totalorder %v675, 2
        %vm677 = vcmp.eq.s32.totalorder %v675, 0
        %v678 = vxor.u32 %v672, 2147483648
        %v679 = vsel %vm677, %v671, %v678
        %vm680 = vcmp.eq.s32.totalorder %v675, 2
        %v681 = vxor.u32 %v671, 2147483648
        %v682 = vsel %vm680, %v681, %v672
        %v683 = vsel %vm676, %v679, %v682
        %v684 = vsel %vm673, nan, %v683
        %v685 = vand.u32 2147483647, %v366
        %vm686 = vcmp.le.f32.partialorder %v685, 0.7853982
        %vm687 = vcmp.lt.s32.totalorder %v366, 0
        %v688 = vand.u32 %v366, 2139095040
        %v689 = vshrl.u32 %v688, 23
        %v690 = vsub.s32 %v689, 127
        %v691 = vand.u32 2147483647, %v366
        %v692 = vand.u32 %v691, 8388607
        %v693 = vor.u32 %v692, 8388608
        %v694 = vsub.s32 0, %v693
        %v695 = vadd.s32 %v690, 1
        %vm696 = vcmp.gt.s32.totalorder %v695, 0
        %v697 = vsel %vm696, %v695, 0
        %v698 = vshrl.u32 %v697, 5
        %v699 = vand.u32 %v697, 31
        %v700 = vsub.s32 32, %v699
        %v701 = vshrl.u32 683565275, %v700
        %v702 = vshll.u32 683565275, %v699
        %v703 = vshrl.u32 2475754826, %v700
        %v704 = vor.u32 %v702, %v703
        %v705 = vshll.u32 2475754826, %v699
        %v706 = vshrl.u32 2131351028, %v700
        %v707 = vor.u32 %v705, %v706
        %v708 = vshll.u32 2131351028, %v699
        %v709 = vshrl.u32 2102212464, %v700
        %v710 = vor.u32 %v708, %v709
        %v711 = vshll.u32 2102212464, %v699
        %v712 = vshrl.u32 920167782, %v700
        %v713 = vor.u32 %v711, %v712
        %v714 = vshll.u32 920167782, %v699
        %v715 = vshrl.u32 1326507024, %v700
        %v716 = vor.u32 %v714, %v715
        %vm717 = vcmp.lt.s32.totalorder %v698, 1
        %vm718 = vcmp.lt.s32.totalorder %v698, 2
        %vm719 = vcmp.lt.s32.totalorder %v698, 3
        %vm720 = vcmp.lt.s32.totalorder %v698, 4
        %v721 = vsel %vm717, %v701, %v704
        %v722 = vsel %vm720, %v710, 2102212464
        %v723 = vsel %vm719, %v707, %v722
        %v724 = vsel %vm718, %v721, %v723
        %v725 = vsel %vm717, %v704, %v707
        %v726 = vsel %vm720, %v713, 920167782
        %v727 = vsel %vm719, %v710, %v726
        %v728 = vsel %vm718, %v725, %v727
        %v729 = vsel %vm717, %v707, %v710
        %v730 = vsel %vm720, %v716, 1326507024
        %v731 = vsel %vm719, %v713, %v730
        %v732 = vsel %vm718, %v729, %v731
        %v733 = vshll.u32 %v693, 8
        %v734 = vmul.u32.u64.compose %v733, %v732
        %v735 = vextract.low.u32 %v734
        %v736 = vextract.high.u32 %v734
        %v737 = vmul.u32.u64.compose %v733, %v728
        %v738 = vextract.low.u32 %v737
        %v739 = vextract.high.u32 %v737
        %v740 = vmul.u32 %v733, %v724
        %v741 = vadd.s32 %v736, %v738
        %vm742 = vc.u32 %v736, %v738
        %v743 = vadd.s32 %v739, 1
        %v744 = vsel %vm742, %v743, %v739
        %v745 = vadd.s32 %v740, %v744
        %v746 = vadd.s32 %v745, 536870912
        %v747 = vshrl.u32 %v746, 30
        %v748 = vshll.u32 %v747, 30
        %v749 = vsub.s32 %v745, %v748
        %vm750 = vcmp.lt.s32.totalorder %v749, 0
        %v751 = vsub.s32 0, %v749
        %v752 = vsel %vm750, %v751, %v749
        %v753 = vclz %v752
        %v754 = vsub.s32 %v753, 2
        %vm755 = vcmp.gt.s32.totalorder 0, %v754
        %v756 = vsel %vm755, 0, %v754
        %v757 = vsub.s32 32, %v756
        %v758 = vshll.u32 %v749, %v756
        %v759 = vshrl.u32 %v741, %v757
        %v760 = vor.u32 %v758, %v759
        %v761 = vsub.s32 4294967266, %v756
        %v762 = vadd.s32 %v761, 127
        %v763 = vshll.u32 %v762, 23
        %v764 = vor.u32 4788187, %v763
        %v765 = vand.u32 2147483647, %v764
        %v767 = vcvt.s32.f32 %v760
        %v768 = vmul.f32 %v767, %v765
        %v769 = vxor.u32 %v768, 2147483648
        %v770 = vsel %vm687, %v769, %v768
        %v771 = vsub.s32 4, %v747
        %v772 = vsel %vm687, %v771, %v747
        %v773 = vsel %vm686, %v366, %v770
        %v774 = vsel %vm686, 0, %v772
        %v775 = vcosq.f32.pop %v773
        %v776 = vsinq.f32.pop %v773
        %vm777 = vweird.f32 %v366
        %v778 = vadd.s32 %v774, 3
        %v779 = vand.u32 %v778, 3
        %vm780 = vcmp.lt.s32.totalorder %v779, 2
        %vm781 = vcmp.eq.s32.totalorder %v779, 0
        %v782 = vxor.u32 %v776, 2147483648
        %v783 = vsel %vm781, %v775, %v782
        %vm784 = vcmp.eq.s32.totalorder %v779, 2
        %v785 = vxor.u32 %v775, 2147483648
        %v786 = vsel %vm784, %v785, %v776
        %v787 = vsel %vm780, %v783, %v786
        %v788 = vsel %vm777, nan, %v787
        %v789 = vand.u32 2147483647, %v367
        %vm790 = vcmp.le.f32.partialorder %v789, 0.7853982
        %vm791 = vcmp.lt.s32.totalorder %v367, 0
        %v792 = vand.u32 %v367, 2139095040
        %v793 = vshrl.u32 %v792, 23
        %v794 = vsub.s32 %v793, 127
        %v795 = vand.u32 2147483647, %v367
        %v796 = vand.u32 %v795, 8388607
        %v797 = vor.u32 %v796, 8388608
        %v798 = vsub.s32 0, %v797
        %v799 = vadd.s32 %v794, 1
        %vm800 = vcmp.gt.s32.totalorder %v799, 0
        %v801 = vsel %vm800, %v799, 0
        %v802 = vshrl.u32 %v801, 5
        %v803 = vand.u32 %v801, 31
        %v804 = vsub.s32 32, %v803
        %v805 = vshrl.u32 683565275, %v804
        %v806 = vshll.u32 683565275, %v803
        %v807 = vshrl.u32 2475754826, %v804
        %v808 = vor.u32 %v806, %v807
        %v809 = vshll.u32 2475754826, %v803
        %v810 = vshrl.u32 2131351028, %v804
        %v811 = vor.u32 %v809, %v810
        %v812 = vshll.u32 2131351028, %v803
        %v813 = vshrl.u32 2102212464, %v804
        %v814 = vor.u32 %v812, %v813
        %v815 = vshll.u32 2102212464, %v803
        %v816 = vshrl.u32 920167782, %v804
        %v817 = vor.u32 %v815, %v816
        %v818 = vshll.u32 920167782, %v803
        %v819 = vshrl.u32 1326507024, %v804
        %v820 = vor.u32 %v818, %v819
        %vm821 = vcmp.lt.s32.totalorder %v802, 1
        %vm822 = vcmp.lt.s32.totalorder %v802, 2
        %vm823 = vcmp.lt.s32.totalorder %v802, 3
        %vm824 = vcmp.lt.s32.totalorder %v802, 4
        %v825 = vsel %vm821, %v805, %v808
        %v826 = vsel %vm824, %v814, 2102212464
        %v827 = vsel %vm823, %v811, %v826
        %v828 = vsel %vm822, %v825, %v827
        %v829 = vsel %vm821, %v808, %v811
        %v830 = vsel %vm824, %v817, 920167782
        %v831 = vsel %vm823, %v814, %v830
        %v832 = vsel %vm822, %v829, %v831
        %v833 = vsel %vm821, %v811, %v814
        %v834 = vsel %vm824, %v820, 1326507024
        %v835 = vsel %vm823, %v817, %v834
        %v836 = vsel %vm822, %v833, %v835
        %v837 = vshll.u32 %v797, 8
        %v838 = vmul.u32.u64.compose %v837, %v836
        %v839 = vextract.low.u32 %v838
        %v840 = vextract.high.u32 %v838
        %v841 = vmul.u32.u64.compose %v837, %v832
        %v842 = vextract.low.u32 %v841
        %v843 = vextract.high.u32 %v841
        %v844 = vmul.u32 %v837, %v828
        %v845 = vadd.s32 %v840, %v842
        %vm846 = vc.u32 %v840, %v842
        %v847 = vadd.s32 %v843, 1
        %v848 = vsel %vm846, %v847, %v843
        %v849 = vadd.s32 %v844, %v848
        %v850 = vadd.s32 %v849, 536870912
        %v851 = vshrl.u32 %v850, 30
        %v852 = vshll.u32 %v851, 30
        %v853 = vsub.s32 %v849, %v852
        %vm854 = vcmp.lt.s32.totalorder %v853, 0
        %v855 = vsub.s32 0, %v853
        %v856 = vsel %vm854, %v855, %v853
        %v857 = vclz %v856
        %v858 = vsub.s32 %v857, 2
        %vm859 = vcmp.gt.s32.totalorder 0, %v858
        %v860 = vsel %vm859, 0, %v858
        %v861 = vsub.s32 32, %v860
        %v862 = vshll.u32 %v853, %v860
        %v863 = vshrl.u32 %v845, %v861
        %v864 = vor.u32 %v862, %v863
        %v865 = vsub.s32 4294967266, %v860
        %v866 = vadd.s32 %v865, 127
        %v867 = vshll.u32 %v866, 23
        %v868 = vor.u32 4788187, %v867
        %v869 = vand.u32 2147483647, %v868
        %v871 = vcvt.s32.f32 %v864
        %v872 = vmul.f32 %v871, %v869
        %v873 = vxor.u32 %v872, 2147483648
        %v874 = vsel %vm791, %v873, %v872
        %v875 = vsub.s32 4, %v851
        %v876 = vsel %vm791, %v875, %v851
        %v877 = vsel %vm790, %v367, %v874
        %v878 = vsel %vm790, 0, %v876
        %v879 = vcosq.f32.pop %v877
        %v880 = vsinq.f32.pop %v877
        %vm881 = vweird.f32 %v367
        %v882 = vadd.s32 %v878, 3
        %v883 = vand.u32 %v882, 3
        %vm884 = vcmp.lt.s32.totalorder %v883, 2
        %vm885 = vcmp.eq.s32.totalorder %v883, 0
        %v886 = vxor.u32 %v880, 2147483648
        %v887 = vsel %vm885, %v879, %v886
        %vm888 = vcmp.eq.s32.totalorder %v883, 2
        %v889 = vxor.u32 %v879, 2147483648
        %v890 = vsel %vm888, %v889, %v880
        %v891 = vsel %vm884, %v887, %v890
        %v892 = vsel %vm881, nan, %v891
        %v893 = vand.u32 2147483647, %v368
        %vm894 = vcmp.le.f32.partialorder %v893, 0.7853982
        %vm895 = vcmp.lt.s32.totalorder %v368, 0
        %v896 = vand.u32 %v368, 2139095040
        %v897 = vshrl.u32 %v896, 23
        %v898 = vsub.s32 %v897, 127
        %v899 = vand.u32 2147483647, %v368
        %v900 = vand.u32 %v899, 8388607
        %v901 = vor.u32 %v900, 8388608
        %v902 = vsub.s32 0, %v901
        %v903 = vadd.s32 %v898, 1
        %vm904 = vcmp.gt.s32.totalorder %v903, 0
        %v905 = vsel %vm904, %v903, 0
        %v906 = vshrl.u32 %v905, 5
        %v907 = vand.u32 %v905, 31
        %v908 = vsub.s32 32, %v907
        %v909 = vshrl.u32 683565275, %v908
        %v910 = vshll.u32 683565275, %v907
        %v911 = vshrl.u32 2475754826, %v908
        %v912 = vor.u32 %v910, %v911
        %v913 = vshll.u32 2475754826, %v907
        %v914 = vshrl.u32 2131351028, %v908
        %v915 = vor.u32 %v913, %v914
        %v916 = vshll.u32 2131351028, %v907
        %v917 = vshrl.u32 2102212464, %v908
        %v918 = vor.u32 %v916, %v917
        %v919 = vshll.u32 2102212464, %v907
        %v920 = vshrl.u32 920167782, %v908
        %v921 = vor.u32 %v919, %v920
        %v922 = vshll.u32 920167782, %v907
        %v923 = vshrl.u32 1326507024, %v908
        %v924 = vor.u32 %v922, %v923
        %vm925 = vcmp.lt.s32.totalorder %v906, 1
        %vm926 = vcmp.lt.s32.totalorder %v906, 2
        %vm927 = vcmp.lt.s32.totalorder %v906, 3
        %vm928 = vcmp.lt.s32.totalorder %v906, 4
        %v929 = vsel %vm925, %v909, %v912
        %v930 = vsel %vm928, %v918, 2102212464
        %v931 = vsel %vm927, %v915, %v930
        %v932 = vsel %vm926, %v929, %v931
        %v933 = vsel %vm925, %v912, %v915
        %v934 = vsel %vm928, %v921, 920167782
        %v935 = vsel %vm927, %v918, %v934
        %v936 = vsel %vm926, %v933, %v935
        %v937 = vsel %vm925, %v915, %v918
        %v938 = vsel %vm928, %v924, 1326507024
        %v939 = vsel %vm927, %v921, %v938
        %v940 = vsel %vm926, %v937, %v939
        %v941 = vshll.u32 %v901, 8
        %v942 = vmul.u32.u64.compose %v941, %v940
        %v943 = vextract.low.u32 %v942
        %v944 = vextract.high.u32 %v942
        %v945 = vmul.u32.u64.compose %v941, %v936
        %v946 = vextract.low.u32 %v945
        %v947 = vextract.high.u32 %v945
        %v948 = vmul.u32 %v941, %v932
        %v949 = vadd.s32 %v944, %v946
        %vm950 = vc.u32 %v944, %v946
        %v951 = vadd.s32 %v947, 1
        %v952 = vsel %vm950, %v951, %v947
        %v953 = vadd.s32 %v948, %v952
        %v954 = vadd.s32 %v953, 536870912
        %v955 = vshrl.u32 %v954, 30
        %v956 = vshll.u32 %v955, 30
        %v957 = vsub.s32 %v953, %v956
        %vm958 = vcmp.lt.s32.totalorder %v957, 0
        %v959 = vsub.s32 0, %v957
        %v960 = vsel %vm958, %v959, %v957
        %v961 = vclz %v960
        %v962 = vsub.s32 %v961, 2
        %vm963 = vcmp.gt.s32.totalorder 0, %v962
        %v964 = vsel %vm963, 0, %v962
        %v965 = vsub.s32 32, %v964
        %v966 = vshll.u32 %v957, %v964
        %v967 = vshrl.u32 %v949, %v965
        %v968 = vor.u32 %v966, %v967
        %v969 = vsub.s32 4294967266, %v964
        %v970 = vadd.s32 %v969, 127
        %v971 = vshll.u32 %v970, 23
        %v972 = vor.u32 4788187, %v971
        %v973 = vand.u32 2147483647, %v972
        %v975 = vcvt.s32.f32 %v968
        %v976 = vmul.f32 %v975, %v973
        %v977 = vxor.u32 %v976, 2147483648
        %v978 = vsel %vm895, %v977, %v976
        %v979 = vsub.s32 4, %v955
        %v980 = vsel %vm895, %v979, %v955
        %v981 = vsel %vm894, %v368, %v978
        %v982 = vsel %vm894, 0, %v980
        %v983 = vcosq.f32.pop %v981
        %v984 = vsinq.f32.pop %v981
        %vm985 = vweird.f32 %v368
        %v986 = vadd.s32 %v982, 3
        %v987 = vand.u32 %v986, 3
        %vm988 = vcmp.lt.s32.totalorder %v987, 2
        %vm989 = vcmp.eq.s32.totalorder %v987, 0
        %v990 = vxor.u32 %v984, 2147483648
        %v991 = vsel %vm989, %v983, %v990
        %vm992 = vcmp.eq.s32.totalorder %v987, 2
        %v993 = vxor.u32 %v983, 2147483648
        %v994 = vsel %vm992, %v993, %v984
        %v995 = vsel %vm988, %v991, %v994
        %v996 = vsel %vm985, nan, %v995
        %v997 = vand.u32 2147483647, %v369
        %vm998 = vcmp.le.f32.partialorder %v997, 0.7853982
        %vm999 = vcmp.lt.s32.totalorder %v369, 0
        %v1000 = vand.u32 %v369, 2139095040
        %v1001 = vshrl.u32 %v1000, 23
        %v1002 = vsub.s32 %v1001, 127
        %v1003 = vand.u32 2147483647, %v369
        %v1004 = vand.u32 %v1003, 8388607
        %v1005 = vor.u32 %v1004, 8388608
        %v1006 = vsub.s32 0, %v1005
        %v1007 = vadd.s32 %v1002, 1
        %vm1008 = vcmp.gt.s32.totalorder %v1007, 0
        %v1009 = vsel %vm1008, %v1007, 0
        %v1010 = vshrl.u32 %v1009, 5
        %v1011 = vand.u32 %v1009, 31
        %v1012 = vsub.s32 32, %v1011
        %v1013 = vshrl.u32 683565275, %v1012
        %v1014 = vshll.u32 683565275, %v1011
        %v1015 = vshrl.u32 2475754826, %v1012
        %v1016 = vor.u32 %v1014, %v1015
        %v1017 = vshll.u32 2475754826, %v1011
        %v1018 = vshrl.u32 2131351028, %v1012
        %v1019 = vor.u32 %v1017, %v1018
        %v1020 = vshll.u32 2131351028, %v1011
        %v1021 = vshrl.u32 2102212464, %v1012
        %v1022 = vor.u32 %v1020, %v1021
        %v1023 = vshll.u32 2102212464, %v1011
        %v1024 = vshrl.u32 920167782, %v1012
        %v1025 = vor.u32 %v1023, %v1024
        %v1026 = vshll.u32 920167782, %v1011
        %v1027 = vshrl.u32 1326507024, %v1012
        %v1028 = vor.u32 %v1026, %v1027
        %vm1029 = vcmp.lt.s32.totalorder %v1010, 1
        %vm1030 = vcmp.lt.s32.totalorder %v1010, 2
        %vm1031 = vcmp.lt.s32.totalorder %v1010, 3
        %vm1032 = vcmp.lt.s32.totalorder %v1010, 4
        %v1033 = vsel %vm1029, %v1013, %v1016
        %v1034 = vsel %vm1032, %v1022, 2102212464
        %v1035 = vsel %vm1031, %v1019, %v1034
        %v1036 = vsel %vm1030, %v1033, %v1035
        %v1037 = vsel %vm1029, %v1016, %v1019
        %v1038 = vsel %vm1032, %v1025, 920167782
        %v1039 = vsel %vm1031, %v1022, %v1038
        %v1040 = vsel %vm1030, %v1037, %v1039
        %v1041 = vsel %vm1029, %v1019, %v1022
        %v1042 = vsel %vm1032, %v1028, 1326507024
        %v1043 = vsel %vm1031, %v1025, %v1042
        %v1044 = vsel %vm1030, %v1041, %v1043
        %v1045 = vshll.u32 %v1005, 8
        %v1046 = vmul.u32.u64.compose %v1045, %v1044
        %v1047 = vextract.low.u32 %v1046
        %v1048 = vextract.high.u32 %v1046
        %v1049 = vmul.u32.u64.compose %v1045, %v1040
        %v1050 = vextract.low.u32 %v1049
        %v1051 = vextract.high.u32 %v1049
        %v1052 = vmul.u32 %v1045, %v1036
        %v1053 = vadd.s32 %v1048, %v1050
        %vm1054 = vc.u32 %v1048, %v1050
        %v1055 = vadd.s32 %v1051, 1
        %v1056 = vsel %vm1054, %v1055, %v1051
        %v1057 = vadd.s32 %v1052, %v1056
        %v1058 = vadd.s32 %v1057, 536870912
        %v1059 = vshrl.u32 %v1058, 30
        %v1060 = vshll.u32 %v1059, 30
        %v1061 = vsub.s32 %v1057, %v1060
        %vm1062 = vcmp.lt.s32.totalorder %v1061, 0
        %v1063 = vsub.s32 0, %v1061
        %v1064 = vsel %vm1062, %v1063, %v1061
        %v1065 = vclz %v1064
        %v1066 = vsub.s32 %v1065, 2
        %vm1067 = vcmp.gt.s32.totalorder 0, %v1066
        %v1068 = vsel %vm1067, 0, %v1066
        %v1069 = vsub.s32 32, %v1068
        %v1070 = vshll.u32 %v1061, %v1068
        %v1071 = vshrl.u32 %v1053, %v1069
        %v1072 = vor.u32 %v1070, %v1071
        %v1073 = vsub.s32 4294967266, %v1068
        %v1074 = vadd.s32 %v1073, 127
        %v1075 = vshll.u32 %v1074, 23
        %v1076 = vor.u32 4788187, %v1075
        %v1077 = vand.u32 2147483647, %v1076
        %v1079 = vcvt.s32.f32 %v1072
        %v1080 = vmul.f32 %v1079, %v1077
        %v1081 = vxor.u32 %v1080, 2147483648
        %v1082 = vsel %vm999, %v1081, %v1080
        %v1083 = vsub.s32 4, %v1059
        %v1084 = vsel %vm999, %v1083, %v1059
        %v1085 = vsel %vm998, %v369, %v1082
        %v1086 = vsel %vm998, 0, %v1084
        %v1087 = vcosq.f32.pop %v1085
        %v1088 = vsinq.f32.pop %v1085
        %vm1089 = vweird.f32 %v369
        %v1090 = vadd.s32 %v1086, 3
        %v1091 = vand.u32 %v1090, 3
        %vm1092 = vcmp.lt.s32.totalorder %v1091, 2
        %vm1093 = vcmp.eq.s32.totalorder %v1091, 0
        %v1094 = vxor.u32 %v1088, 2147483648
        %v1095 = vsel %vm1093, %v1087, %v1094
        %vm1096 = vcmp.eq.s32.totalorder %v1091, 2
        %v1097 = vxor.u32 %v1087, 2147483648
        %v1098 = vsel %vm1096, %v1097, %v1088
        %v1099 = vsel %vm1092, %v1095, %v1098
        %v1100 = vsel %vm1089, nan, %v1099
        %v1101 = vand.u32 2147483647, %v370
        %vm1102 = vcmp.le.f32.partialorder %v1101, 0.7853982
        %vm1103 = vcmp.lt.s32.totalorder %v370, 0
        %v1104 = vand.u32 %v370, 2139095040
        %v1105 = vshrl.u32 %v1104, 23
        %v1106 = vsub.s32 %v1105, 127
        %v1107 = vand.u32 2147483647, %v370
        %v1108 = vand.u32 %v1107, 8388607
        %v1109 = vor.u32 %v1108, 8388608
        %v1110 = vsub.s32 0, %v1109
        %v1111 = vadd.s32 %v1106, 1
        %vm1112 = vcmp.gt.s32.totalorder %v1111, 0
        %v1113 = vsel %vm1112, %v1111, 0
        %v1114 = vshrl.u32 %v1113, 5
        %v1115 = vand.u32 %v1113, 31
        %v1116 = vsub.s32 32, %v1115
        %v1117 = vshrl.u32 683565275, %v1116
        %v1118 = vshll.u32 683565275, %v1115
        %v1119 = vshrl.u32 2475754826, %v1116
        %v1120 = vor.u32 %v1118, %v1119
        %v1121 = vshll.u32 2475754826, %v1115
        %v1122 = vshrl.u32 2131351028, %v1116
        %v1123 = vor.u32 %v1121, %v1122
        %v1124 = vshll.u32 2131351028, %v1115
        %v1125 = vshrl.u32 2102212464, %v1116
        %v1126 = vor.u32 %v1124, %v1125
        %v1127 = vshll.u32 2102212464, %v1115
        %v1128 = vshrl.u32 920167782, %v1116
        %v1129 = vor.u32 %v1127, %v1128
        %v1130 = vshll.u32 920167782, %v1115
        %v1131 = vshrl.u32 1326507024, %v1116
        %v1132 = vor.u32 %v1130, %v1131
        %vm1133 = vcmp.lt.s32.totalorder %v1114, 1
        %vm1134 = vcmp.lt.s32.totalorder %v1114, 2
        %vm1135 = vcmp.lt.s32.totalorder %v1114, 3
        %vm1136 = vcmp.lt.s32.totalorder %v1114, 4
        %v1137 = vsel %vm1133, %v1117, %v1120
        %v1138 = vsel %vm1136, %v1126, 2102212464
        %v1139 = vsel %vm1135, %v1123, %v1138
        %v1140 = vsel %vm1134, %v1137, %v1139
        %v1141 = vsel %vm1133, %v1120, %v1123
        %v1142 = vsel %vm1136, %v1129, 920167782
        %v1143 = vsel %vm1135, %v1126, %v1142
        %v1144 = vsel %vm1134, %v1141, %v1143
        %v1145 = vsel %vm1133, %v1123, %v1126
        %v1146 = vsel %vm1136, %v1132, 1326507024
        %v1147 = vsel %vm1135, %v1129, %v1146
        %v1148 = vsel %vm1134, %v1145, %v1147
        %v1149 = vshll.u32 %v1109, 8
        %v1150 = vmul.u32.u64.compose %v1149, %v1148
        %v1151 = vextract.low.u32 %v1150
        %v1152 = vextract.high.u32 %v1150
        %v1153 = vmul.u32.u64.compose %v1149, %v1144
        %v1154 = vextract.low.u32 %v1153
        %v1155 = vextract.high.u32 %v1153
        %v1156 = vmul.u32 %v1149, %v1140
        %v1157 = vadd.s32 %v1152, %v1154
        %vm1158 = vc.u32 %v1152, %v1154
        %v1159 = vadd.s32 %v1155, 1
        %v1160 = vsel %vm1158, %v1159, %v1155
        %v1161 = vadd.s32 %v1156, %v1160
        %v1162 = vadd.s32 %v1161, 536870912
        %v1163 = vshrl.u32 %v1162, 30
        %v1164 = vshll.u32 %v1163, 30
        %v1165 = vsub.s32 %v1161, %v1164
        %vm1166 = vcmp.lt.s32.totalorder %v1165, 0
        %v1167 = vsub.s32 0, %v1165
        %v1168 = vsel %vm1166, %v1167, %v1165
        %v1169 = vclz %v1168
        %v1170 = vsub.s32 %v1169, 2
        %vm1171 = vcmp.gt.s32.totalorder 0, %v1170
        %v1172 = vsel %vm1171, 0, %v1170
        %v1173 = vsub.s32 32, %v1172
        %v1174 = vshll.u32 %v1165, %v1172
        %v1175 = vshrl.u32 %v1157, %v1173
        %v1176 = vor.u32 %v1174, %v1175
        %v1177 = vsub.s32 4294967266, %v1172
        %v1178 = vadd.s32 %v1177, 127
        %v1179 = vshll.u32 %v1178, 23
        %v1180 = vor.u32 4788187, %v1179
        %v1181 = vand.u32 2147483647, %v1180
        %v1183 = vcvt.s32.f32 %v1176
        %v1184 = vmul.f32 %v1183, %v1181
        %v1185 = vxor.u32 %v1184, 2147483648
        %v1186 = vsel %vm1103, %v1185, %v1184
        %v1187 = vsub.s32 4, %v1163
        %v1188 = vsel %vm1103, %v1187, %v1163
        %v1189 = vsel %vm1102, %v370, %v1186
        %v1190 = vsel %vm1102, 0, %v1188
        %v1191 = vcosq.f32.pop %v1189
        %v1192 = vsinq.f32.pop %v1189
        %vm1193 = vweird.f32 %v370
        %v1194 = vadd.s32 %v1190, 3
        %v1195 = vand.u32 %v1194, 3
        %vm1196 = vcmp.lt.s32.totalorder %v1195, 2
        %vm1197 = vcmp.eq.s32.totalorder %v1195, 0
        %v1198 = vxor.u32 %v1192, 2147483648
        %v1199 = vsel %vm1197, %v1191, %v1198
        %vm1200 = vcmp.eq.s32.totalorder %v1195, 2
        %v1201 = vxor.u32 %v1191, 2147483648
        %v1202 = vsel %vm1200, %v1201, %v1192
        %v1203 = vsel %vm1196, %v1199, %v1202
        %v1204 = vsel %vm1193, nan, %v1203
        %v1205 = vand.u32 2147483647, %v371
        %vm1206 = vcmp.le.f32.partialorder %v1205, 0.7853982
        %vm1207 = vcmp.lt.s32.totalorder %v371, 0
        %v1208 = vand.u32 %v371, 2139095040
        %v1209 = vshrl.u32 %v1208, 23
        %v1210 = vsub.s32 %v1209, 127
        %v1211 = vand.u32 2147483647, %v371
        %v1212 = vand.u32 %v1211, 8388607
        %v1213 = vor.u32 %v1212, 8388608
        %v1214 = vsub.s32 0, %v1213
        %v1215 = vadd.s32 %v1210, 1
        %vm1216 = vcmp.gt.s32.totalorder %v1215, 0
        %v1217 = vsel %vm1216, %v1215, 0
        %v1218 = vshrl.u32 %v1217, 5
        %v1219 = vand.u32 %v1217, 31
        %v1220 = vsub.s32 32, %v1219
        %v1221 = vshrl.u32 683565275, %v1220
        %v1222 = vshll.u32 683565275, %v1219
        %v1223 = vshrl.u32 2475754826, %v1220
        %v1224 = vor.u32 %v1222, %v1223
        %v1225 = vshll.u32 2475754826, %v1219
        %v1226 = vshrl.u32 2131351028, %v1220
        %v1227 = vor.u32 %v1225, %v1226
        %v1228 = vshll.u32 2131351028, %v1219
        %v1229 = vshrl.u32 2102212464, %v1220
        %v1230 = vor.u32 %v1228, %v1229
        %v1231 = vshll.u32 2102212464, %v1219
        %v1232 = vshrl.u32 920167782, %v1220
        %v1233 = vor.u32 %v1231, %v1232
        %v1234 = vshll.u32 920167782, %v1219
        %v1235 = vshrl.u32 1326507024, %v1220
        %v1236 = vor.u32 %v1234, %v1235
        %vm1237 = vcmp.lt.s32.totalorder %v1218, 1
        %vm1238 = vcmp.lt.s32.totalorder %v1218, 2
        %vm1239 = vcmp.lt.s32.totalorder %v1218, 3
        %vm1240 = vcmp.lt.s32.totalorder %v1218, 4
        %v1241 = vsel %vm1237, %v1221, %v1224
        %v1242 = vsel %vm1240, %v1230, 2102212464
        %v1243 = vsel %vm1239, %v1227, %v1242
        %v1244 = vsel %vm1238, %v1241, %v1243
        %v1245 = vsel %vm1237, %v1224, %v1227
        %v1246 = vsel %vm1240, %v1233, 920167782
        %v1247 = vsel %vm1239, %v1230, %v1246
        %v1248 = vsel %vm1238, %v1245, %v1247
        %v1249 = vsel %vm1237, %v1227, %v1230
        %v1250 = vsel %vm1240, %v1236, 1326507024
        %v1251 = vsel %vm1239, %v1233, %v1250
        %v1252 = vsel %vm1238, %v1249, %v1251
        %v1253 = vshll.u32 %v1213, 8
        %v1254 = vmul.u32.u64.compose %v1253, %v1252
        %v1255 = vextract.low.u32 %v1254
        %v1256 = vextract.high.u32 %v1254
        %v1257 = vmul.u32.u64.compose %v1253, %v1248
        %v1258 = vextract.low.u32 %v1257
        %v1259 = vextract.high.u32 %v1257
        %v1260 = vmul.u32 %v1253, %v1244
        %v1261 = vadd.s32 %v1256, %v1258
        %vm1262 = vc.u32 %v1256, %v1258
        %v1263 = vadd.s32 %v1259, 1
        %v1264 = vsel %vm1262, %v1263, %v1259
        %v1265 = vadd.s32 %v1260, %v1264
        %v1266 = vadd.s32 %v1265, 536870912
        %v1267 = vshrl.u32 %v1266, 30
        %v1268 = vshll.u32 %v1267, 30
        %v1269 = vsub.s32 %v1265, %v1268
        %vm1270 = vcmp.lt.s32.totalorder %v1269, 0
        %v1271 = vsub.s32 0, %v1269
        %v1272 = vsel %vm1270, %v1271, %v1269
        %v1273 = vclz %v1272
        %v1274 = vsub.s32 %v1273, 2
        %vm1275 = vcmp.gt.s32.totalorder 0, %v1274
        %v1276 = vsel %vm1275, 0, %v1274
        %v1277 = vsub.s32 32, %v1276
        %v1278 = vshll.u32 %v1269, %v1276
        %v1279 = vshrl.u32 %v1261, %v1277
        %v1280 = vor.u32 %v1278, %v1279
        %v1281 = vsub.s32 4294967266, %v1276
        %v1282 = vadd.s32 %v1281, 127
        %v1283 = vshll.u32 %v1282, 23
        %v1284 = vor.u32 4788187, %v1283
        %v1285 = vand.u32 2147483647, %v1284
        %v1287 = vcvt.s32.f32 %v1280
        %v1288 = vmul.f32 %v1287, %v1285
        %v1289 = vxor.u32 %v1288, 2147483648
        %v1290 = vsel %vm1207, %v1289, %v1288
        %v1291 = vsub.s32 4, %v1267
        %v1292 = vsel %vm1207, %v1291, %v1267
        %v1293 = vsel %vm1206, %v371, %v1290
        %v1294 = vsel %vm1206, 0, %v1292
        %v1295 = vcosq.f32.pop %v1293
        %v1296 = vsinq.f32.pop %v1293
        %vm1297 = vweird.f32 %v371
        %v1298 = vadd.s32 %v1294, 3
        %v1299 = vand.u32 %v1298, 3
        %vm1300 = vcmp.lt.s32.totalorder %v1299, 2
        %vm1301 = vcmp.eq.s32.totalorder %v1299, 0
        %v1302 = vxor.u32 %v1296, 2147483648
        %v1303 = vsel %vm1301, %v1295, %v1302
        %vm1304 = vcmp.eq.s32.totalorder %v1299, 2
        %v1305 = vxor.u32 %v1295, 2147483648
        %v1306 = vsel %vm1304, %v1305, %v1296
        %v1307 = vsel %vm1300, %v1303, %v1306
        %v1308 = vsel %vm1297, nan, %v1307
        %v1309 = vand.u32 2147483647, %v372
        %vm1310 = vcmp.le.f32.partialorder %v1309, 0.7853982
        %vm1311 = vcmp.lt.s32.totalorder %v372, 0
        %v1312 = vand.u32 %v372, 2139095040
        %v1313 = vshrl.u32 %v1312, 23
        %v1314 = vsub.s32 %v1313, 127
        %v1315 = vand.u32 2147483647, %v372
        %v1316 = vand.u32 %v1315, 8388607
        %v1317 = vor.u32 %v1316, 8388608
        %v1318 = vsub.s32 0, %v1317
        %v1319 = vadd.s32 %v1314, 1
        %vm1320 = vcmp.gt.s32.totalorder %v1319, 0
        %v1321 = vsel %vm1320, %v1319, 0
        %v1322 = vshrl.u32 %v1321, 5
        %v1323 = vand.u32 %v1321, 31
        %v1324 = vsub.s32 32, %v1323
        %v1325 = vshrl.u32 683565275, %v1324
        %v1326 = vshll.u32 683565275, %v1323
        %v1327 = vshrl.u32 2475754826, %v1324
        %v1328 = vor.u32 %v1326, %v1327
        %v1329 = vshll.u32 2475754826, %v1323
        %v1330 = vshrl.u32 2131351028, %v1324
        %v1331 = vor.u32 %v1329, %v1330
        %v1332 = vshll.u32 2131351028, %v1323
        %v1333 = vshrl.u32 2102212464, %v1324
        %v1334 = vor.u32 %v1332, %v1333
        %v1335 = vshll.u32 2102212464, %v1323
        %v1336 = vshrl.u32 920167782, %v1324
        %v1337 = vor.u32 %v1335, %v1336
        %v1338 = vshll.u32 920167782, %v1323
        %v1339 = vshrl.u32 1326507024, %v1324
        %v1340 = vor.u32 %v1338, %v1339
        %vm1341 = vcmp.lt.s32.totalorder %v1322, 1
        %vm1342 = vcmp.lt.s32.totalorder %v1322, 2
        %vm1343 = vcmp.lt.s32.totalorder %v1322, 3
        %vm1344 = vcmp.lt.s32.totalorder %v1322, 4
        %v1345 = vsel %vm1341, %v1325, %v1328
        %v1346 = vsel %vm1344, %v1334, 2102212464
        %v1347 = vsel %vm1343, %v1331, %v1346
        %v1348 = vsel %vm1342, %v1345, %v1347
        %v1349 = vsel %vm1341, %v1328, %v1331
        %v1350 = vsel %vm1344, %v1337, 920167782
        %v1351 = vsel %vm1343, %v1334, %v1350
        %v1352 = vsel %vm1342, %v1349, %v1351
        %v1353 = vsel %vm1341, %v1331, %v1334
        %v1354 = vsel %vm1344, %v1340, 1326507024
        %v1355 = vsel %vm1343, %v1337, %v1354
        %v1356 = vsel %vm1342, %v1353, %v1355
        %v1357 = vshll.u32 %v1317, 8
        %v1358 = vmul.u32.u64.compose %v1357, %v1356
        %v1359 = vextract.low.u32 %v1358
        %v1360 = vextract.high.u32 %v1358
        %v1361 = vmul.u32.u64.compose %v1357, %v1352
        %v1362 = vextract.low.u32 %v1361
        %v1363 = vextract.high.u32 %v1361
        %v1364 = vmul.u32 %v1357, %v1348
        %v1365 = vadd.s32 %v1360, %v1362
        %vm1366 = vc.u32 %v1360, %v1362
        %v1367 = vadd.s32 %v1363, 1
        %v1368 = vsel %vm1366, %v1367, %v1363
        %v1369 = vadd.s32 %v1364, %v1368
        %v1370 = vadd.s32 %v1369, 536870912
        %v1371 = vshrl.u32 %v1370, 30
        %v1372 = vshll.u32 %v1371, 30
        %v1373 = vsub.s32 %v1369, %v1372
        %vm1374 = vcmp.lt.s32.totalorder %v1373, 0
        %v1375 = vsub.s32 0, %v1373
        %v1376 = vsel %vm1374, %v1375, %v1373
        %v1377 = vclz %v1376
        %v1378 = vsub.s32 %v1377, 2
        %vm1379 = vcmp.gt.s32.totalorder 0, %v1378
        %v1380 = vsel %vm1379, 0, %v1378
        %v1381 = vsub.s32 32, %v1380
        %v1382 = vshll.u32 %v1373, %v1380
        %v1383 = vshrl.u32 %v1365, %v1381
        %v1384 = vor.u32 %v1382, %v1383
        %v1385 = vsub.s32 4294967266, %v1380
        %v1386 = vadd.s32 %v1385, 127
        %v1387 = vshll.u32 %v1386, 23
        %v1388 = vor.u32 4788187, %v1387
        %v1389 = vand.u32 2147483647, %v1388
        %v1391 = vcvt.s32.f32 %v1384
        %v1392 = vmul.f32 %v1391, %v1389
        %v1393 = vxor.u32 %v1392, 2147483648
        %v1394 = vsel %vm1311, %v1393, %v1392
        %v1395 = vsub.s32 4, %v1371
        %v1396 = vsel %vm1311, %v1395, %v1371
        %v1397 = vsel %vm1310, %v372, %v1394
        %v1398 = vsel %vm1310, 0, %v1396
        %v1399 = vcosq.f32.pop %v1397
        %v1400 = vsinq.f32.pop %v1397
        %vm1401 = vweird.f32 %v372
        %v1402 = vadd.s32 %v1398, 3
        %v1403 = vand.u32 %v1402, 3
        %vm1404 = vcmp.lt.s32.totalorder %v1403, 2
        %vm1405 = vcmp.eq.s32.totalorder %v1403, 0
        %v1406 = vxor.u32 %v1400, 2147483648
        %v1407 = vsel %vm1405, %v1399, %v1406
        %vm1408 = vcmp.eq.s32.totalorder %v1403, 2
        %v1409 = vxor.u32 %v1399, 2147483648
        %v1410 = vsel %vm1408, %v1409, %v1400
        %v1411 = vsel %vm1404, %v1407, %v1410
        %v1412 = vsel %vm1401, nan, %v1411
        %1413 = vst [vmem:[%s176] sm:$0xff] %v476
        %1414 = vst [vmem:[%s176 + $0x8] sm:$0xff] %v580
        %1415 = vst [vmem:[%s176 + $0x10] sm:$0xff] %v684
        %1416 = vst [vmem:[%s176 + $0x18] sm:$0xff] %v788
        %1417 = vst [vmem:[%s176 + $0x20] sm:$0xff] %v892
        %1418 = vst [vmem:[%s176 + $0x28] sm:$0xff] %v996
        %1419 = vst [vmem:[%s176 + $0x30] sm:$0xff] %v1100
        %1420 = vst [vmem:[%s176 + $0x38] sm:$0xff] %v1204
        %1421 = vst [vmem:[%s176 + $0x40] sm:$0xff] %v1308
        %1422 = vst [vmem:[%s176 + $0x48] sm:$0xff] %v1412
        %s1423 = sand.u32 %s93, 1
        %s1424 = scalar_lea.sflag [#allocation3], %s1423
        %s1425 = sand.u32 %s93, 1
        %s1426 = smul.addr %s1425, 80
        %s1427 = scalar_lea.vmem [#allocation2], %s1426
        // Predicated region
        $region33: #{tpu_custom_call.1} parent=31 // pred_check
          %p1428 = pneg %p103
        $region34: #{tpu_custom_call.1} parent=31 // pred_check_branch
          %1430 = sbr.rel (%p1428) target = $region36
        $region35: #{tpu_custom_call.1} parent=31 // pred_region
          %s1431 = smul.u32 10, %s17
          %s1432 = ssub.s32 38, %s1431
          %p1433 = scmp.lt.s32.totalorder %s1432, 10
          %s1434 = scalar_select %p1433, %s1432, 10
          %s1435 = smul.u32 128, %s1434
          %s1437 = ssub.s32 1280, %s1435
          %1438 = vsyncadd %s1424, %s1437
          %p1439 = scmp.ne.s32.totalorder 0, %s1435
          %s1440 = smul.addr %s1431, 128
          %s1441 = scalar_lea.hbm %s3, %s1440
          %s1442 = smul.u32 8, %s1434
          %s1443 = sshll.u32 %s1427, 4
          %s1444 = int_to_ptr.vmem [resolvable:$true] %s1443
          %s1445 = sshll.u32 %s1442, 4
          %1449 = dma.vmem_to_hbm [thread:$0]  (%p1439), %s1444, %s1445, %s1441, %s1424, 128, 128, 8
        $region36: #{tpu_custom_call.1} parent=31 // pred_fallthru
          _
      $region32: #{tpu_custom_call.1} parent=5 // pred_fallthru
        _
      %p1450 = scmp.le.s32.totalorder 2, %s12
      // Predicated region
      $region37: #{tpu_custom_call.1} parent=5 // pred_check
        %p1451 = pneg %p1450
      $region38: #{tpu_custom_call.1} parent=5 // pred_check_branch
        %1453 = sbr.rel (%p1451) target = $region40
      $region39: #{tpu_custom_call.1} parent=5 // pred_region
        %s1454 = ssub.s32 %s12, 2
        // Predicated region
        $region41: #{tpu_custom_call.1} parent=39 // pred_check
          %p1455 = pneg %p109
        $region42: #{tpu_custom_call.1} parent=39 // pred_check_branch
          %1457 = sbr.rel (%p1455) target = $region44
        $region43: #{tpu_custom_call.1} parent=39 // pred_region
          %s1458 = sand.u32 %s94, 1
          %s1459 = scalar_lea.sflag [#allocation3], %s1458
          %s1460 = sand.u32 %s94, 1
          %s1461 = smul.addr %s1460, 80
          %s1462 = scalar_lea.vmem [#allocation2], %s1461
          %1463 = dma.done %s1459, 1280
        $region44: #{tpu_custom_call.1} parent=39 // pred_fallthru
          _
      $region40: #{tpu_custom_call.1} parent=5 // pred_fallthru
        _
    $region6: #{tpu_custom_call.1} parent=1 // loop_footer
      %s16 = sadd.s32 1, %s12
    $region7: #{tpu_custom_call.1} parent=1 // loop_footer_branch
      %11 = sbr.rel target = $region3
    $region8: #{tpu_custom_call.1} parent=1 // loop_exit
      _
    %1464 = vsyncpa [#allocation3], 1
    %s1465 = scalar_lea.sflag [#allocation3], 1
    %1466 = vsyncpa %s1465, 1

</llo_original>
